<compile_context>
chip_gen: v6e
topology: v6e:2x2x1
jax: 0.10.0
libtpu: 0.0.40
codegen_flags: <defaults>
</compile_context>

<pallas_src>
import functools
import numpy as np
import jax
import jax.numpy as jnp
from jax.experimental import pallas as pl
from jax.experimental.pallas import tpu as pltpu  # noqa: F401  (TPU backend)


# ----------------------------------------------------------------------------
# One fused kernel: num_layers LSTM layers over the full sequence + final FC.
# refs = (x, w_0..w_{L-1}, b_0..b_{L-1}, fc_w, fc_b, out)
# ----------------------------------------------------------------------------
def _fused_lstm_fc_kernel(*refs, seq, num_layers, batch, hidden):
    x_ref = refs[0]
    w_refs = refs[1:1 + num_layers]
    b_refs = refs[1 + num_layers:1 + 2 * num_layers]
    fcw_ref = refs[1 + 2 * num_layers]
    fcb_ref = refs[2 + 2 * num_layers]
    out_ref = refs[3 + 2 * num_layers]

    H = hidden
    # Per-timestep inputs of the current layer (tiny, VMEM resident -> values).
    layer_in = [x_ref[t] for t in range(seq)]

    h_finals = []
    for l in range(num_layers):
        w = w_refs[l][...]          # (in_dim_l + H, 4H)  stacked [W_ih^T ; W_hh^T]
        b = b_refs[l][...]          # (1, 4H)             b_ih + b_hh

        h = jnp.zeros((batch, H), jnp.float32)
        c = jnp.zeros((batch, H), jnp.float32)
        outs = []
        # Fully unrolled time loop (static trip count) — no grid/pipeline
        # overhead per step; sequential dependency is handled in-register.
        for t in range(seq):
            xh = jnp.concatenate([layer_in[t], h], axis=-1)      # (batch, in_dim_l+H)
            gates = (jnp.dot(xh, w, preferred_element_type=jnp.float32)
                     + b)                                        # (batch, 4H)
            # PyTorch gate order: i, f, g, o
            i_g = jax.nn.sigmoid(gates[:, 0 * H:1 * H])
            f_g = jax.nn.sigmoid(gates[:, 1 * H:2 * H])
            g_g = jnp.tanh(gates[:, 2 * H:3 * H])
            o_g = jax.nn.sigmoid(gates[:, 3 * H:4 * H])
            c = f_g * c + i_g * g_g
            h = o_g * jnp.tanh(c)
            outs.append(h)
        layer_in = outs             # feed this layer's sequence to the next layer
        h_finals.append(h)          # final hidden state of this layer

    # h_out.view(-1, hidden): (num_layers, batch, H) -> (num_layers*batch, H)
    h_cat = jnp.concatenate(h_finals, axis=0)
    out = (jnp.dot(h_cat, fcw_ref[...], preferred_element_type=jnp.float32)
           + fcb_ref[...])
    out_ref[...] = out.astype(out_ref.dtype)


# ----------------------------------------------------------------------------
# Wrapper: weight prep + single pallas_call.
# ----------------------------------------------------------------------------
def lstm_module_forward(x, params):
    """x: (batch, seq, input_size). Returns (num_layers*batch, num_classes)."""
    batch, seq, _ = x.shape
    num_layers = len(params["lstm"])
    hidden = params["lstm"][0]["w_hh"].shape[1]
    num_classes = params["fc_w"].shape[0]

    x_seq = jnp.transpose(x, (1, 0, 2)).astype(jnp.float32)     # time-major (seq, B, in)

    weights, biases = [], []
    for lp in params["lstm"]:
        # Merge the two per-step matmuls: stacked weight (in_dim + H, 4H).
        w = jnp.concatenate([lp["w_ih"].T, lp["w_hh"].T], axis=0).astype(jnp.float32)
        weights.append(w)
        biases.append((lp["b_ih"] + lp["b_hh"]).reshape(1, 4 * hidden).astype(jnp.float32))

    fc_w = jnp.asarray(params["fc_w"].T, jnp.float32)           # (H, num_classes)
    fc_b = params["fc_b"].reshape(1, num_classes).astype(jnp.float32)

    kernel = functools.partial(_fused_lstm_fc_kernel, seq=seq,
                               num_layers=num_layers, batch=batch, hidden=hidden)

    return pl.pallas_call(
        kernel,
        out_shape=jax.ShapeDtypeStruct((num_layers * batch, num_classes), jnp.float32),
        # No grid / BlockSpecs: every operand is a full-array VMEM resident.
    )(x_seq, *weights, *biases, fc_w, fc_b)


# ----------------------------------------------------------------------------
# Deterministic parameter init (PyTorch-style uniform(-1/sqrt(H), 1/sqrt(H))).
# ----------------------------------------------------------------------------
def init_params(key, num_classes, num_layers, input_size, hidden_size):
    bound = 1.0 / np.sqrt(hidden_size)
    params = {"lstm": []}
    for layer in range(num_layers):
        in_dim = input_size if layer == 0 else hidden_size
        key, k1, k2, k3, k4 = jax.random.split(key, 5)
        params["lstm"].append({
            "w_ih": jax.random.uniform(k1, (4 * hidden_size, in_dim),
                                       jnp.float32, -bound, bound),
            "w_hh": jax.random.uniform(k2, (4 * hidden_size, hidden_size),
                                       jnp.float32, -bound, bound),
            "b_ih": jax.random.uniform(k3, (4 * hidden_size,),
                                       jnp.float32, -bound, bound),
            "b_hh": jax.random.uniform(k4, (4 * hidden_size,),
                                       jnp.float32, -bound, bound),
        })
    key, k5, k6 = jax.random.split(key, 3)
    params["fc_w"] = jax.random.uniform(k5, (num_classes, hidden_size),
                                        jnp.float32, -bound, bound)
    params["fc_b"] = jax.random.uniform(k6, (num_classes,),
                                        jnp.float32, -bound, bound)
    return params


# ----------------------------------------------------------------------------
# Pure-JAX reference (lax.scan) for correctness checking.
# ----------------------------------------------------------------------------
def ref_forward(x, params):
    x_seq = jnp.transpose(x, (1, 0, 2)).astype(jnp.float32)
    batch = x.shape[0]
    h_finals = []
    layer_in = x_seq
    for lp in params["lstm"]:
        hidden = lp["w_hh"].shape[1]
        wih_t, whh_t = lp["w_ih"].T, lp["w_hh"].T
        b = lp["b_ih"] + lp["b_hh"]

        def step(carry, x_t):
            h, c = carry
            g = x_t @ wih_t + h @ whh_t + b
            i = jax.nn.sigmoid(g[:, 0 * hidden:1 * hidden])
            f = jax.nn.sigmoid(g[:, 1 * hidden:2 * hidden])
            gg = jnp.tanh(g[:, 2 * hidden:3 * hidden])
            o = jax.nn.sigmoid(g[:, 3 * hidden:4 * hidden])
            c = f * c + i * gg
            h = o * jnp.tanh(c)
            return (h, c), h

        init = (jnp.zeros((batch, hidden), jnp.float32),
                jnp.zeros((batch, hidden), jnp.float32))
        (h_fin, _), h_seq = jax.lax.scan(step, init, layer_in)
        h_finals.append(h_fin)
        layer_in = h_seq
    h_out = jnp.stack(h_finals, 0).reshape(-1, h_finals[0].shape[-1])
    return h_out @ params["fc_w"].T + params["fc_b"]


if __name__ == "__main__":
    # Small shapes consistent with the module's forward.
    num_classes, num_layers = 4, 2
    input_size, hidden_size, seq_length = 4, 32, 8
    batch = 2

    key = jax.random.PRNGKey(0)
    key, kx = jax.random.split(key)
    x = jax.random.normal(kx, (batch, seq_length, input_size), jnp.float32)
    params = init_params(key, num_classes, num_layers, input_size, hidden_size)

    out = lstm_module_forward(x, params)
    out = jax.block_until_ready(out)

    ref = jax.block_until_ready(ref_forward(x, params))
    np.testing.assert_allclose(np.asarray(out), np.asarray(ref),
                               rtol=1e-5, atol=1e-5)
    assert out.shape == (num_layers * batch, num_classes)
    print("KERNEL_OK")
</pallas_src>

<mosaic_0001>
module attributes {stable_mosaic.version = 11 : i64} {
  func.func @_fused_lstm_fc_kernel(%arg0: memref<8x2x4xf32, #tpu.memory_space<vmem>>, %arg1: memref<36x128xf32, #tpu.memory_space<vmem>>, %arg2: memref<64x128xf32, #tpu.memory_space<vmem>>, %arg3: memref<1x128xf32, #tpu.memory_space<vmem>>, %arg4: memref<1x128xf32, #tpu.memory_space<vmem>>, %arg5: memref<32x4xf32, #tpu.memory_space<vmem>>, %arg6: memref<1x4xf32, #tpu.memory_space<vmem>>, %arg7: memref<4x4xf32, #tpu.memory_space<vmem>>) attributes {dimension_semantics = [], scalar_prefetch = 0 : i64, scratch_operands = 0 : i64, tpu.core_type = #tpu.core_type<tc>} {
    %c0 = arith.constant 0 : index
    %c0_0 = arith.constant 0 : index
    %c0_1 = arith.constant 0 : index
    %0 = vector.load %arg0[%c0, %c0_0, %c0_1] : memref<8x2x4xf32, #tpu.memory_space<vmem>>, vector<1x2x4xf32>
    %1 = vector.shape_cast %0 : vector<1x2x4xf32> to vector<2x4xf32>
    %c1 = arith.constant 1 : index
    %c0_2 = arith.constant 0 : index
    %c0_3 = arith.constant 0 : index
    %2 = vector.load %arg0[%c1, %c0_2, %c0_3] : memref<8x2x4xf32, #tpu.memory_space<vmem>>, vector<1x2x4xf32>
    %3 = vector.shape_cast %2 : vector<1x2x4xf32> to vector<2x4xf32>
    %c2 = arith.constant 2 : index
    %c0_4 = arith.constant 0 : index
    %c0_5 = arith.constant 0 : index
    %4 = vector.load %arg0[%c2, %c0_4, %c0_5] : memref<8x2x4xf32, #tpu.memory_space<vmem>>, vector<1x2x4xf32>
    %5 = vector.shape_cast %4 : vector<1x2x4xf32> to vector<2x4xf32>
    %c3 = arith.constant 3 : index
    %c0_6 = arith.constant 0 : index
    %c0_7 = arith.constant 0 : index
    %6 = vector.load %arg0[%c3, %c0_6, %c0_7] : memref<8x2x4xf32, #tpu.memory_space<vmem>>, vector<1x2x4xf32>
    %7 = vector.shape_cast %6 : vector<1x2x4xf32> to vector<2x4xf32>
    %c4 = arith.constant 4 : index
    %c0_8 = arith.constant 0 : index
    %c0_9 = arith.constant 0 : index
    %8 = vector.load %arg0[%c4, %c0_8, %c0_9] : memref<8x2x4xf32, #tpu.memory_space<vmem>>, vector<1x2x4xf32>
    %9 = vector.shape_cast %8 : vector<1x2x4xf32> to vector<2x4xf32>
    %c5 = arith.constant 5 : index
    %c0_10 = arith.constant 0 : index
    %c0_11 = arith.constant 0 : index
    %10 = vector.load %arg0[%c5, %c0_10, %c0_11] : memref<8x2x4xf32, #tpu.memory_space<vmem>>, vector<1x2x4xf32>
    %11 = vector.shape_cast %10 : vector<1x2x4xf32> to vector<2x4xf32>
    %c6 = arith.constant 6 : index
    %c0_12 = arith.constant 0 : index
    %c0_13 = arith.constant 0 : index
    %12 = vector.load %arg0[%c6, %c0_12, %c0_13] : memref<8x2x4xf32, #tpu.memory_space<vmem>>, vector<1x2x4xf32>
    %13 = vector.shape_cast %12 : vector<1x2x4xf32> to vector<2x4xf32>
    %c7 = arith.constant 7 : index
    %c0_14 = arith.constant 0 : index
    %c0_15 = arith.constant 0 : index
    %14 = vector.load %arg0[%c7, %c0_14, %c0_15] : memref<8x2x4xf32, #tpu.memory_space<vmem>>, vector<1x2x4xf32>
    %15 = vector.shape_cast %14 : vector<1x2x4xf32> to vector<2x4xf32>
    %c0_16 = arith.constant 0 : index
    %c0_17 = arith.constant 0 : index
    %16 = vector.load %arg1[%c0_16, %c0_17] : memref<36x128xf32, #tpu.memory_space<vmem>>, vector<36x128xf32>
    %c0_18 = arith.constant 0 : index
    %c0_19 = arith.constant 0 : index
    %17 = vector.load %arg3[%c0_18, %c0_19] : memref<1x128xf32, #tpu.memory_space<vmem>>, vector<1x128xf32>
    %cst = arith.constant 0.000000e+00 : f32
    %18 = vector.broadcast %cst : f32 to vector<2x32xf32>
    %cst_20 = arith.constant 0.000000e+00 : f32
    %19 = vector.broadcast %cst_20 : f32 to vector<2x32xf32>
    %20 = tpu.concatenate %1, %18 in 1 : vector<2x4xf32>, vector<2x32xf32> -> vector<2x36xf32>
    %cst_21 = arith.constant dense<0.000000e+00> : vector<2x128xf32>
    %21 = tpu.matmul %20, %16, %cst_21 {dimension_numbers = #tpu.dot_dimension_numbers<[1], [0], [0], [1], [0, 0, 1, 1], [], []>} : vector<2x36xf32>, vector<36x128xf32>, vector<2x128xf32> -> vector<2x128xf32>
    %22 = vector.broadcast %17 : vector<1x128xf32> to vector<2x128xf32>
    %23 = arith.addf %21, %22 : vector<2x128xf32>
    %24 = vector.extract_strided_slice %23 {offsets = [0, 0], sizes = [2, 32], strides = [1, 1]} : vector<2x128xf32> to vector<2x32xf32>
    %25 = arith.negf %24 : vector<2x32xf32>
    %26 = math.exp %25 : vector<2x32xf32>
    %cst_22 = arith.constant 1.000000e+00 : f32
    %27 = vector.broadcast %cst_22 : f32 to vector<2x32xf32>
    %28 = arith.addf %27, %26 : vector<2x32xf32>
    %29 = arith.divf %27, %28 : vector<2x32xf32>
    %30 = vector.extract_strided_slice %23 {offsets = [0, 32], sizes = [2, 32], strides = [1, 1]} : vector<2x128xf32> to vector<2x32xf32>
    %31 = arith.negf %30 : vector<2x32xf32>
    %32 = math.exp %31 : vector<2x32xf32>
    %cst_23 = arith.constant 1.000000e+00 : f32
    %33 = vector.broadcast %cst_23 : f32 to vector<2x32xf32>
    %34 = arith.addf %33, %32 : vector<2x32xf32>
    %35 = arith.divf %33, %34 : vector<2x32xf32>
    %36 = vector.extract_strided_slice %23 {offsets = [0, 64], sizes = [2, 32], strides = [1, 1]} : vector<2x128xf32> to vector<2x32xf32>
    %37 = math.tanh %36 : vector<2x32xf32>
    %38 = vector.extract_strided_slice %23 {offsets = [0, 96], sizes = [2, 32], strides = [1, 1]} : vector<2x128xf32> to vector<2x32xf32>
    %39 = arith.negf %38 : vector<2x32xf32>
    %40 = math.exp %39 : vector<2x32xf32>
    %cst_24 = arith.constant 1.000000e+00 : f32
    %41 = vector.broadcast %cst_24 : f32 to vector<2x32xf32>
    %42 = arith.addf %41, %40 : vector<2x32xf32>
    %43 = arith.divf %41, %42 : vector<2x32xf32>
    %44 = arith.mulf %35, %19 : vector<2x32xf32>
    %45 = arith.mulf %29, %37 : vector<2x32xf32>
    %46 = arith.addf %44, %45 : vector<2x32xf32>
    %47 = math.tanh %46 : vector<2x32xf32>
    %48 = arith.mulf %43, %47 : vector<2x32xf32>
    %49 = tpu.concatenate %3, %48 in 1 : vector<2x4xf32>, vector<2x32xf32> -> vector<2x36xf32>
    %cst_25 = arith.constant dense<0.000000e+00> : vector<2x128xf32>
    %50 = tpu.matmul %49, %16, %cst_25 {dimension_numbers = #tpu.dot_dimension_numbers<[1], [0], [0], [1], [0, 0, 1, 1], [], []>} : vector<2x36xf32>, vector<36x128xf32>, vector<2x128xf32> -> vector<2x128xf32>
    %51 = vector.broadcast %17 : vector<1x128xf32> to vector<2x128xf32>
    %52 = arith.addf %50, %51 : vector<2x128xf32>
    %53 = vector.extract_strided_slice %52 {offsets = [0, 0], sizes = [2, 32], strides = [1, 1]} : vector<2x128xf32> to vector<2x32xf32>
    %54 = arith.negf %53 : vector<2x32xf32>
    %55 = math.exp %54 : vector<2x32xf32>
    %cst_26 = arith.constant 1.000000e+00 : f32
    %56 = vector.broadcast %cst_26 : f32 to vector<2x32xf32>
    %57 = arith.addf %56, %55 : vector<2x32xf32>
    %58 = arith.divf %56, %57 : vector<2x32xf32>
    %59 = vector.extract_strided_slice %52 {offsets = [0, 32], sizes = [2, 32], strides = [1, 1]} : vector<2x128xf32> to vector<2x32xf32>
    %60 = arith.negf %59 : vector<2x32xf32>
    %61 = math.exp %60 : vector<2x32xf32>
    %cst_27 = arith.constant 1.000000e+00 : f32
    %62 = vector.broadcast %cst_27 : f32 to vector<2x32xf32>
    %63 = arith.addf %62, %61 : vector<2x32xf32>
    %64 = arith.divf %62, %63 : vector<2x32xf32>
    %65 = vector.extract_strided_slice %52 {offsets = [0, 64], sizes = [2, 32], strides = [1, 1]} : vector<2x128xf32> to vector<2x32xf32>
    %66 = math.tanh %65 : vector<2x32xf32>
    %67 = vector.extract_strided_slice %52 {offsets = [0, 96], sizes = [2, 32], strides = [1, 1]} : vector<2x128xf32> to vector<2x32xf32>
    %68 = arith.negf %67 : vector<2x32xf32>
    %69 = math.exp %68 : vector<2x32xf32>
    %cst_28 = arith.constant 1.000000e+00 : f32
    %70 = vector.broadcast %cst_28 : f32 to vector<2x32xf32>
    %71 = arith.addf %70, %69 : vector<2x32xf32>
    %72 = arith.divf %70, %71 : vector<2x32xf32>
    %73 = arith.mulf %64, %46 : vector<2x32xf32>
    %74 = arith.mulf %58, %66 : vector<2x32xf32>
    %75 = arith.addf %73, %74 : vector<2x32xf32>
    %76 = math.tanh %75 : vector<2x32xf32>
    %77 = arith.mulf %72, %76 : vector<2x32xf32>
    %78 = tpu.concatenate %5, %77 in 1 : vector<2x4xf32>, vector<2x32xf32> -> vector<2x36xf32>
    %cst_29 = arith.constant dense<0.000000e+00> : vector<2x128xf32>
    %79 = tpu.matmul %78, %16, %cst_29 {dimension_numbers = #tpu.dot_dimension_numbers<[1], [0], [0], [1], [0, 0, 1, 1], [], []>} : vector<2x36xf32>, vector<36x128xf32>, vector<2x128xf32> -> vector<2x128xf32>
    %80 = vector.broadcast %17 : vector<1x128xf32> to vector<2x128xf32>
    %81 = arith.addf %79, %80 : vector<2x128xf32>
    %82 = vector.extract_strided_slice %81 {offsets = [0, 0], sizes = [2, 32], strides = [1, 1]} : vector<2x128xf32> to vector<2x32xf32>
    %83 = arith.negf %82 : vector<2x32xf32>
    %84 = math.exp %83 : vector<2x32xf32>
    %cst_30 = arith.constant 1.000000e+00 : f32
    %85 = vector.broadcast %cst_30 : f32 to vector<2x32xf32>
    %86 = arith.addf %85, %84 : vector<2x32xf32>
    %87 = arith.divf %85, %86 : vector<2x32xf32>
    %88 = vector.extract_strided_slice %81 {offsets = [0, 32], sizes = [2, 32], strides = [1, 1]} : vector<2x128xf32> to vector<2x32xf32>
    %89 = arith.negf %88 : vector<2x32xf32>
    %90 = math.exp %89 : vector<2x32xf32>
    %cst_31 = arith.constant 1.000000e+00 : f32
    %91 = vector.broadcast %cst_31 : f32 to vector<2x32xf32>
    %92 = arith.addf %91, %90 : vector<2x32xf32>
    %93 = arith.divf %91, %92 : vector<2x32xf32>
    %94 = vector.extract_strided_slice %81 {offsets = [0, 64], sizes = [2, 32], strides = [1, 1]} : vector<2x128xf32> to vector<2x32xf32>
    %95 = math.tanh %94 : vector<2x32xf32>
    %96 = vector.extract_strided_slice %81 {offsets = [0, 96], sizes = [2, 32], strides = [1, 1]} : vector<2x128xf32> to vector<2x32xf32>
    %97 = arith.negf %96 : vector<2x32xf32>
    %98 = math.exp %97 : vector<2x32xf32>
    %cst_32 = arith.constant 1.000000e+00 : f32
    %99 = vector.broadcast %cst_32 : f32 to vector<2x32xf32>
    %100 = arith.addf %99, %98 : vector<2x32xf32>
    %101 = arith.divf %99, %100 : vector<2x32xf32>
    %102 = arith.mulf %93, %75 : vector<2x32xf32>
    %103 = arith.mulf %87, %95 : vector<2x32xf32>
    %104 = arith.addf %102, %103 : vector<2x32xf32>
    %105 = math.tanh %104 : vector<2x32xf32>
    %106 = arith.mulf %101, %105 : vector<2x32xf32>
    %107 = tpu.concatenate %7, %106 in 1 : vector<2x4xf32>, vector<2x32xf32> -> vector<2x36xf32>
    %cst_33 = arith.constant dense<0.000000e+00> : vector<2x128xf32>
    %108 = tpu.matmul %107, %16, %cst_33 {dimension_numbers = #tpu.dot_dimension_numbers<[1], [0], [0], [1], [0, 0, 1, 1], [], []>} : vector<2x36xf32>, vector<36x128xf32>, vector<2x128xf32> -> vector<2x128xf32>
    %109 = vector.broadcast %17 : vector<1x128xf32> to vector<2x128xf32>
    %110 = arith.addf %108, %109 : vector<2x128xf32>
    %111 = vector.extract_strided_slice %110 {offsets = [0, 0], sizes = [2, 32], strides = [1, 1]} : vector<2x128xf32> to vector<2x32xf32>
    %112 = arith.negf %111 : vector<2x32xf32>
    %113 = math.exp %112 : vector<2x32xf32>
    %cst_34 = arith.constant 1.000000e+00 : f32
    %114 = vector.broadcast %cst_34 : f32 to vector<2x32xf32>
    %115 = arith.addf %114, %113 : vector<2x32xf32>
    %116 = arith.divf %114, %115 : vector<2x32xf32>
    %117 = vector.extract_strided_slice %110 {offsets = [0, 32], sizes = [2, 32], strides = [1, 1]} : vector<2x128xf32> to vector<2x32xf32>
    %118 = arith.negf %117 : vector<2x32xf32>
    %119 = math.exp %118 : vector<2x32xf32>
    %cst_35 = arith.constant 1.000000e+00 : f32
    %120 = vector.broadcast %cst_35 : f32 to vector<2x32xf32>
    %121 = arith.addf %120, %119 : vector<2x32xf32>
    %122 = arith.divf %120, %121 : vector<2x32xf32>
    %123 = vector.extract_strided_slice %110 {offsets = [0, 64], sizes = [2, 32], strides = [1, 1]} : vector<2x128xf32> to vector<2x32xf32>
    %124 = math.tanh %123 : vector<2x32xf32>
    %125 = vector.extract_strided_slice %110 {offsets = [0, 96], sizes = [2, 32], strides = [1, 1]} : vector<2x128xf32> to vector<2x32xf32>
    %126 = arith.negf %125 : vector<2x32xf32>
    %127 = math.exp %126 : vector<2x32xf32>
    %cst_36 = arith.constant 1.000000e+00 : f32
    %128 = vector.broadcast %cst_36 : f32 to vector<2x32xf32>
    %129 = arith.addf %128, %127 : vector<2x32xf32>
    %130 = arith.divf %128, %129 : vector<2x32xf32>
    %131 = arith.mulf %122, %104 : vector<2x32xf32>
    %132 = arith.mulf %116, %124 : vector<2x32xf32>
    %133 = arith.addf %131, %132 : vector<2x32xf32>
    %134 = math.tanh %133 : vector<2x32xf32>
    %135 = arith.mulf %130, %134 : vector<2x32xf32>
    %136 = tpu.concatenate %9, %135 in 1 : vector<2x4xf32>, vector<2x32xf32> -> vector<2x36xf32>
    %cst_37 = arith.constant dense<0.000000e+00> : vector<2x128xf32>
    %137 = tpu.matmul %136, %16, %cst_37 {dimension_numbers = #tpu.dot_dimension_numbers<[1], [0], [0], [1], [0, 0, 1, 1], [], []>} : vector<2x36xf32>, vector<36x128xf32>, vector<2x128xf32> -> vector<2x128xf32>
    %138 = vector.broadcast %17 : vector<1x128xf32> to vector<2x128xf32>
    %139 = arith.addf %137, %138 : vector<2x128xf32>
    %140 = vector.extract_strided_slice %139 {offsets = [0, 0], sizes = [2, 32], strides = [1, 1]} : vector<2x128xf32> to vector<2x32xf32>
    %141 = arith.negf %140 : vector<2x32xf32>
    %142 = math.exp %141 : vector<2x32xf32>
    %cst_38 = arith.constant 1.000000e+00 : f32
    %143 = vector.broadcast %cst_38 : f32 to vector<2x32xf32>
    %144 = arith.addf %143, %142 : vector<2x32xf32>
    %145 = arith.divf %143, %144 : vector<2x32xf32>
    %146 = vector.extract_strided_slice %139 {offsets = [0, 32], sizes = [2, 32], strides = [1, 1]} : vector<2x128xf32> to vector<2x32xf32>
    %147 = arith.negf %146 : vector<2x32xf32>
    %148 = math.exp %147 : vector<2x32xf32>
    %cst_39 = arith.constant 1.000000e+00 : f32
    %149 = vector.broadcast %cst_39 : f32 to vector<2x32xf32>
    %150 = arith.addf %149, %148 : vector<2x32xf32>
    %151 = arith.divf %149, %150 : vector<2x32xf32>
    %152 = vector.extract_strided_slice %139 {offsets = [0, 64], sizes = [2, 32], strides = [1, 1]} : vector<2x128xf32> to vector<2x32xf32>
    %153 = math.tanh %152 : vector<2x32xf32>
    %154 = vector.extract_strided_slice %139 {offsets = [0, 96], sizes = [2, 32], strides = [1, 1]} : vector<2x128xf32> to vector<2x32xf32>
    %155 = arith.negf %154 : vector<2x32xf32>
    %156 = math.exp %155 : vector<2x32xf32>
    %cst_40 = arith.constant 1.000000e+00 : f32
    %157 = vector.broadcast %cst_40 : f32 to vector<2x32xf32>
    %158 = arith.addf %157, %156 : vector<2x32xf32>
    %159 = arith.divf %157, %158 : vector<2x32xf32>
    %160 = arith.mulf %151, %133 : vector<2x32xf32>
    %161 = arith.mulf %145, %153 : vector<2x32xf32>
    %162 = arith.addf %160, %161 : vector<2x32xf32>
    %163 = math.tanh %162 : vector<2x32xf32>
    %164 = arith.mulf %159, %163 : vector<2x32xf32>
    %165 = tpu.concatenate %11, %164 in 1 : vector<2x4xf32>, vector<2x32xf32> -> vector<2x36xf32>
    %cst_41 = arith.constant dense<0.000000e+00> : vector<2x128xf32>
    %166 = tpu.matmul %165, %16, %cst_41 {dimension_numbers = #tpu.dot_dimension_numbers<[1], [0], [0], [1], [0, 0, 1, 1], [], []>} : vector<2x36xf32>, vector<36x128xf32>, vector<2x128xf32> -> vector<2x128xf32>
    %167 = vector.broadcast %17 : vector<1x128xf32> to vector<2x128xf32>
    %168 = arith.addf %166, %167 : vector<2x128xf32>
    %169 = vector.extract_strided_slice %168 {offsets = [0, 0], sizes = [2, 32], strides = [1, 1]} : vector<2x128xf32> to vector<2x32xf32>
    %170 = arith.negf %169 : vector<2x32xf32>
    %171 = math.exp %170 : vector<2x32xf32>
    %cst_42 = arith.constant 1.000000e+00 : f32
    %172 = vector.broadcast %cst_42 : f32 to vector<2x32xf32>
    %173 = arith.addf %172, %171 : vector<2x32xf32>
    %174 = arith.divf %172, %173 : vector<2x32xf32>
    %175 = vector.extract_strided_slice %168 {offsets = [0, 32], sizes = [2, 32], strides = [1, 1]} : vector<2x128xf32> to vector<2x32xf32>
    %176 = arith.negf %175 : vector<2x32xf32>
    %177 = math.exp %176 : vector<2x32xf32>
    %cst_43 = arith.constant 1.000000e+00 : f32
    %178 = vector.broadcast %cst_43 : f32 to vector<2x32xf32>
    %179 = arith.addf %178, %177 : vector<2x32xf32>
    %180 = arith.divf %178, %179 : vector<2x32xf32>
    %181 = vector.extract_strided_slice %168 {offsets = [0, 64], sizes = [2, 32], strides = [1, 1]} : vector<2x128xf32> to vector<2x32xf32>
    %182 = math.tanh %181 : vector<2x32xf32>
    %183 = vector.extract_strided_slice %168 {offsets = [0, 96], sizes = [2, 32], strides = [1, 1]} : vector<2x128xf32> to vector<2x32xf32>
    %184 = arith.negf %183 : vector<2x32xf32>
    %185 = math.exp %184 : vector<2x32xf32>
    %cst_44 = arith.constant 1.000000e+00 : f32
    %186 = vector.broadcast %cst_44 : f32 to vector<2x32xf32>
    %187 = arith.addf %186, %185 : vector<2x32xf32>
    %188 = arith.divf %186, %187 : vector<2x32xf32>
    %189 = arith.mulf %180, %162 : vector<2x32xf32>
    %190 = arith.mulf %174, %182 : vector<2x32xf32>
    %191 = arith.addf %189, %190 : vector<2x32xf32>
    %192 = math.tanh %191 : vector<2x32xf32>
    %193 = arith.mulf %188, %192 : vector<2x32xf32>
    %194 = tpu.concatenate %13, %193 in 1 : vector<2x4xf32>, vector<2x32xf32> -> vector<2x36xf32>
    %cst_45 = arith.constant dense<0.000000e+00> : vector<2x128xf32>
    %195 = tpu.matmul %194, %16, %cst_45 {dimension_numbers = #tpu.dot_dimension_numbers<[1], [0], [0], [1], [0, 0, 1, 1], [], []>} : vector<2x36xf32>, vector<36x128xf32>, vector<2x128xf32> -> vector<2x128xf32>
    %196 = vector.broadcast %17 : vector<1x128xf32> to vector<2x128xf32>
    %197 = arith.addf %195, %196 : vector<2x128xf32>
    %198 = vector.extract_strided_slice %197 {offsets = [0, 0], sizes = [2, 32], strides = [1, 1]} : vector<2x128xf32> to vector<2x32xf32>
    %199 = arith.negf %198 : vector<2x32xf32>
    %200 = math.exp %199 : vector<2x32xf32>
    %cst_46 = arith.constant 1.000000e+00 : f32
    %201 = vector.broadcast %cst_46 : f32 to vector<2x32xf32>
    %202 = arith.addf %201, %200 : vector<2x32xf32>
    %203 = arith.divf %201, %202 : vector<2x32xf32>
    %204 = vector.extract_strided_slice %197 {offsets = [0, 32], sizes = [2, 32], strides = [1, 1]} : vector<2x128xf32> to vector<2x32xf32>
    %205 = arith.negf %204 : vector<2x32xf32>
    %206 = math.exp %205 : vector<2x32xf32>
    %cst_47 = arith.constant 1.000000e+00 : f32
    %207 = vector.broadcast %cst_47 : f32 to vector<2x32xf32>
    %208 = arith.addf %207, %206 : vector<2x32xf32>
    %209 = arith.divf %207, %208 : vector<2x32xf32>
    %210 = vector.extract_strided_slice %197 {offsets = [0, 64], sizes = [2, 32], strides = [1, 1]} : vector<2x128xf32> to vector<2x32xf32>
    %211 = math.tanh %210 : vector<2x32xf32>
    %212 = vector.extract_strided_slice %197 {offsets = [0, 96], sizes = [2, 32], strides = [1, 1]} : vector<2x128xf32> to vector<2x32xf32>
    %213 = arith.negf %212 : vector<2x32xf32>
    %214 = math.exp %213 : vector<2x32xf32>
    %cst_48 = arith.constant 1.000000e+00 : f32
    %215 = vector.broadcast %cst_48 : f32 to vector<2x32xf32>
    %216 = arith.addf %215, %214 : vector<2x32xf32>
    %217 = arith.divf %215, %216 : vector<2x32xf32>
    %218 = arith.mulf %209, %191 : vector<2x32xf32>
    %219 = arith.mulf %203, %211 : vector<2x32xf32>
    %220 = arith.addf %218, %219 : vector<2x32xf32>
    %221 = math.tanh %220 : vector<2x32xf32>
    %222 = arith.mulf %217, %221 : vector<2x32xf32>
    %223 = tpu.concatenate %15, %222 in 1 : vector<2x4xf32>, vector<2x32xf32> -> vector<2x36xf32>
    %cst_49 = arith.constant dense<0.000000e+00> : vector<2x128xf32>
    %224 = tpu.matmul %223, %16, %cst_49 {dimension_numbers = #tpu.dot_dimension_numbers<[1], [0], [0], [1], [0, 0, 1, 1], [], []>} : vector<2x36xf32>, vector<36x128xf32>, vector<2x128xf32> -> vector<2x128xf32>
    %225 = vector.broadcast %17 : vector<1x128xf32> to vector<2x128xf32>
    %226 = arith.addf %224, %225 : vector<2x128xf32>
    %227 = vector.extract_strided_slice %226 {offsets = [0, 0], sizes = [2, 32], strides = [1, 1]} : vector<2x128xf32> to vector<2x32xf32>
    %228 = arith.negf %227 : vector<2x32xf32>
    %229 = math.exp %228 : vector<2x32xf32>
    %cst_50 = arith.constant 1.000000e+00 : f32
    %230 = vector.broadcast %cst_50 : f32 to vector<2x32xf32>
    %231 = arith.addf %230, %229 : vector<2x32xf32>
    %232 = arith.divf %230, %231 : vector<2x32xf32>
    %233 = vector.extract_strided_slice %226 {offsets = [0, 32], sizes = [2, 32], strides = [1, 1]} : vector<2x128xf32> to vector<2x32xf32>
    %234 = arith.negf %233 : vector<2x32xf32>
    %235 = math.exp %234 : vector<2x32xf32>
    %cst_51 = arith.constant 1.000000e+00 : f32
    %236 = vector.broadcast %cst_51 : f32 to vector<2x32xf32>
    %237 = arith.addf %236, %235 : vector<2x32xf32>
    %238 = arith.divf %236, %237 : vector<2x32xf32>
    %239 = vector.extract_strided_slice %226 {offsets = [0, 64], sizes = [2, 32], strides = [1, 1]} : vector<2x128xf32> to vector<2x32xf32>
    %240 = math.tanh %239 : vector<2x32xf32>
    %241 = vector.extract_strided_slice %226 {offsets = [0, 96], sizes = [2, 32], strides = [1, 1]} : vector<2x128xf32> to vector<2x32xf32>
    %242 = arith.negf %241 : vector<2x32xf32>
    %243 = math.exp %242 : vector<2x32xf32>
    %cst_52 = arith.constant 1.000000e+00 : f32
    %244 = vector.broadcast %cst_52 : f32 to vector<2x32xf32>
    %245 = arith.addf %244, %243 : vector<2x32xf32>
    %246 = arith.divf %244, %245 : vector<2x32xf32>
    %247 = arith.mulf %238, %220 : vector<2x32xf32>
    %248 = arith.mulf %232, %240 : vector<2x32xf32>
    %249 = arith.addf %247, %248 : vector<2x32xf32>
    %250 = math.tanh %249 : vector<2x32xf32>
    %251 = arith.mulf %246, %250 : vector<2x32xf32>
    %c0_53 = arith.constant 0 : index
    %c0_54 = arith.constant 0 : index
    %252 = vector.load %arg2[%c0_53, %c0_54] : memref<64x128xf32, #tpu.memory_space<vmem>>, vector<64x128xf32>
    %c0_55 = arith.constant 0 : index
    %c0_56 = arith.constant 0 : index
    %253 = vector.load %arg4[%c0_55, %c0_56] : memref<1x128xf32, #tpu.memory_space<vmem>>, vector<1x128xf32>
    %cst_57 = arith.constant 0.000000e+00 : f32
    %254 = vector.broadcast %cst_57 : f32 to vector<2x32xf32>
    %cst_58 = arith.constant 0.000000e+00 : f32
    %255 = vector.broadcast %cst_58 : f32 to vector<2x32xf32>
    %256 = tpu.concatenate %48, %254 in 1 : vector<2x32xf32>, vector<2x32xf32> -> vector<2x64xf32>
    %cst_59 = arith.constant dense<0.000000e+00> : vector<2x128xf32>
    %257 = tpu.matmul %256, %252, %cst_59 {dimension_numbers = #tpu.dot_dimension_numbers<[1], [0], [0], [1], [0, 0, 1, 1], [], []>} : vector<2x64xf32>, vector<64x128xf32>, vector<2x128xf32> -> vector<2x128xf32>
    %258 = vector.broadcast %253 : vector<1x128xf32> to vector<2x128xf32>
    %259 = arith.addf %257, %258 : vector<2x128xf32>
    %260 = vector.extract_strided_slice %259 {offsets = [0, 0], sizes = [2, 32], strides = [1, 1]} : vector<2x128xf32> to vector<2x32xf32>
    %261 = arith.negf %260 : vector<2x32xf32>
    %262 = math.exp %261 : vector<2x32xf32>
    %cst_60 = arith.constant 1.000000e+00 : f32
    %263 = vector.broadcast %cst_60 : f32 to vector<2x32xf32>
    %264 = arith.addf %263, %262 : vector<2x32xf32>
    %265 = arith.divf %263, %264 : vector<2x32xf32>
    %266 = vector.extract_strided_slice %259 {offsets = [0, 32], sizes = [2, 32], strides = [1, 1]} : vector<2x128xf32> to vector<2x32xf32>
    %267 = arith.negf %266 : vector<2x32xf32>
    %268 = math.exp %267 : vector<2x32xf32>
    %cst_61 = arith.constant 1.000000e+00 : f32
    %269 = vector.broadcast %cst_61 : f32 to vector<2x32xf32>
    %270 = arith.addf %269, %268 : vector<2x32xf32>
    %271 = arith.divf %269, %270 : vector<2x32xf32>
    %272 = vector.extract_strided_slice %259 {offsets = [0, 64], sizes = [2, 32], strides = [1, 1]} : vector<2x128xf32> to vector<2x32xf32>
    %273 = math.tanh %272 : vector<2x32xf32>
    %274 = vector.extract_strided_slice %259 {offsets = [0, 96], sizes = [2, 32], strides = [1, 1]} : vector<2x128xf32> to vector<2x32xf32>
    %275 = arith.negf %274 : vector<2x32xf32>
    %276 = math.exp %275 : vector<2x32xf32>
    %cst_62 = arith.constant 1.000000e+00 : f32
    %277 = vector.broadcast %cst_62 : f32 to vector<2x32xf32>
    %278 = arith.addf %277, %276 : vector<2x32xf32>
    %279 = arith.divf %277, %278 : vector<2x32xf32>
    %280 = arith.mulf %271, %255 : vector<2x32xf32>
    %281 = arith.mulf %265, %273 : vector<2x32xf32>
    %282 = arith.addf %280, %281 : vector<2x32xf32>
    %283 = math.tanh %282 : vector<2x32xf32>
    %284 = arith.mulf %279, %283 : vector<2x32xf32>
    %285 = tpu.concatenate %77, %284 in 1 : vector<2x32xf32>, vector<2x32xf32> -> vector<2x64xf32>
    %cst_63 = arith.constant dense<0.000000e+00> : vector<2x128xf32>
    %286 = tpu.matmul %285, %252, %cst_63 {dimension_numbers = #tpu.dot_dimension_numbers<[1], [0], [0], [1], [0, 0, 1, 1], [], []>} : vector<2x64xf32>, vector<64x128xf32>, vector<2x128xf32> -> vector<2x128xf32>
    %287 = vector.broadcast %253 : vector<1x128xf32> to vector<2x128xf32>
    %288 = arith.addf %286, %287 : vector<2x128xf32>
    %289 = vector.extract_strided_slice %288 {offsets = [0, 0], sizes = [2, 32], strides = [1, 1]} : vector<2x128xf32> to vector<2x32xf32>
    %290 = arith.negf %289 : vector<2x32xf32>
    %291 = math.exp %290 : vector<2x32xf32>
    %cst_64 = arith.constant 1.000000e+00 : f32
    %292 = vector.broadcast %cst_64 : f32 to vector<2x32xf32>
    %293 = arith.addf %292, %291 : vector<2x32xf32>
    %294 = arith.divf %292, %293 : vector<2x32xf32>
    %295 = vector.extract_strided_slice %288 {offsets = [0, 32], sizes = [2, 32], strides = [1, 1]} : vector<2x128xf32> to vector<2x32xf32>
    %296 = arith.negf %295 : vector<2x32xf32>
    %297 = math.exp %296 : vector<2x32xf32>
    %cst_65 = arith.constant 1.000000e+00 : f32
    %298 = vector.broadcast %cst_65 : f32 to vector<2x32xf32>
    %299 = arith.addf %298, %297 : vector<2x32xf32>
    %300 = arith.divf %298, %299 : vector<2x32xf32>
    %301 = vector.extract_strided_slice %288 {offsets = [0, 64], sizes = [2, 32], strides = [1, 1]} : vector<2x128xf32> to vector<2x32xf32>
    %302 = math.tanh %301 : vector<2x32xf32>
    %303 = vector.extract_strided_slice %288 {offsets = [0, 96], sizes = [2, 32], strides = [1, 1]} : vector<2x128xf32> to vector<2x32xf32>
    %304 = arith.negf %303 : vector<2x32xf32>
    %305 = math.exp %304 : vector<2x32xf32>
    %cst_66 = arith.constant 1.000000e+00 : f32
    %306 = vector.broadcast %cst_66 : f32 to vector<2x32xf32>
    %307 = arith.addf %306, %305 : vector<2x32xf32>
    %308 = arith.divf %306, %307 : vector<2x32xf32>
    %309 = arith.mulf %300, %282 : vector<2x32xf32>
    %310 = arith.mulf %294, %302 : vector<2x32xf32>
    %311 = arith.addf %309, %310 : vector<2x32xf32>
    %312 = math.tanh %311 : vector<2x32xf32>
    %313 = arith.mulf %308, %312 : vector<2x32xf32>
    %314 = tpu.concatenate %106, %313 in 1 : vector<2x32xf32>, vector<2x32xf32> -> vector<2x64xf32>
    %cst_67 = arith.constant dense<0.000000e+00> : vector<2x128xf32>
    %315 = tpu.matmul %314, %252, %cst_67 {dimension_numbers = #tpu.dot_dimension_numbers<[1], [0], [0], [1], [0, 0, 1, 1], [], []>} : vector<2x64xf32>, vector<64x128xf32>, vector<2x128xf32> -> vector<2x128xf32>
    %316 = vector.broadcast %253 : vector<1x128xf32> to vector<2x128xf32>
    %317 = arith.addf %315, %316 : vector<2x128xf32>
    %318 = vector.extract_strided_slice %317 {offsets = [0, 0], sizes = [2, 32], strides = [1, 1]} : vector<2x128xf32> to vector<2x32xf32>
    %319 = arith.negf %318 : vector<2x32xf32>
    %320 = math.exp %319 : vector<2x32xf32>
    %cst_68 = arith.constant 1.000000e+00 : f32
    %321 = vector.broadcast %cst_68 : f32 to vector<2x32xf32>
    %322 = arith.addf %321, %320 : vector<2x32xf32>
    %323 = arith.divf %321, %322 : vector<2x32xf32>
    %324 = vector.extract_strided_slice %317 {offsets = [0, 32], sizes = [2, 32], strides = [1, 1]} : vector<2x128xf32> to vector<2x32xf32>
    %325 = arith.negf %324 : vector<2x32xf32>
    %326 = math.exp %325 : vector<2x32xf32>
    %cst_69 = arith.constant 1.000000e+00 : f32
    %327 = vector.broadcast %cst_69 : f32 to vector<2x32xf32>
    %328 = arith.addf %327, %326 : vector<2x32xf32>
    %329 = arith.divf %327, %328 : vector<2x32xf32>
    %330 = vector.extract_strided_slice %317 {offsets = [0, 64], sizes = [2, 32], strides = [1, 1]} : vector<2x128xf32> to vector<2x32xf32>
    %331 = math.tanh %330 : vector<2x32xf32>
    %332 = vector.extract_strided_slice %317 {offsets = [0, 96], sizes = [2, 32], strides = [1, 1]} : vector<2x128xf32> to vector<2x32xf32>
    %333 = arith.negf %332 : vector<2x32xf32>
    %334 = math.exp %333 : vector<2x32xf32>
    %cst_70 = arith.constant 1.000000e+00 : f32
    %335 = vector.broadcast %cst_70 : f32 to vector<2x32xf32>
    %336 = arith.addf %335, %334 : vector<2x32xf32>
    %337 = arith.divf %335, %336 : vector<2x32xf32>
    %338 = arith.mulf %329, %311 : vector<2x32xf32>
    %339 = arith.mulf %323, %331 : vector<2x32xf32>
    %340 = arith.addf %338, %339 : vector<2x32xf32>
    %341 = math.tanh %340 : vector<2x32xf32>
    %342 = arith.mulf %337, %341 : vector<2x32xf32>
    %343 = tpu.concatenate %135, %342 in 1 : vector<2x32xf32>, vector<2x32xf32> -> vector<2x64xf32>
    %cst_71 = arith.constant dense<0.000000e+00> : vector<2x128xf32>
    %344 = tpu.matmul %343, %252, %cst_71 {dimension_numbers = #tpu.dot_dimension_numbers<[1], [0], [0], [1], [0, 0, 1, 1], [], []>} : vector<2x64xf32>, vector<64x128xf32>, vector<2x128xf32> -> vector<2x128xf32>
    %345 = vector.broadcast %253 : vector<1x128xf32> to vector<2x128xf32>
    %346 = arith.addf %344, %345 : vector<2x128xf32>
    %347 = vector.extract_strided_slice %346 {offsets = [0, 0], sizes = [2, 32], strides = [1, 1]} : vector<2x128xf32> to vector<2x32xf32>
    %348 = arith.negf %347 : vector<2x32xf32>
    %349 = math.exp %348 : vector<2x32xf32>
    %cst_72 = arith.constant 1.000000e+00 : f32
    %350 = vector.broadcast %cst_72 : f32 to vector<2x32xf32>
    %351 = arith.addf %350, %349 : vector<2x32xf32>
    %352 = arith.divf %350, %351 : vector<2x32xf32>
    %353 = vector.extract_strided_slice %346 {offsets = [0, 32], sizes = [2, 32], strides = [1, 1]} : vector<2x128xf32> to vector<2x32xf32>
    %354 = arith.negf %353 : vector<2x32xf32>
    %355 = math.exp %354 : vector<2x32xf32>
    %cst_73 = arith.constant 1.000000e+00 : f32
    %356 = vector.broadcast %cst_73 : f32 to vector<2x32xf32>
    %357 = arith.addf %356, %355 : vector<2x32xf32>
    %358 = arith.divf %356, %357 : vector<2x32xf32>
    %359 = vector.extract_strided_slice %346 {offsets = [0, 64], sizes = [2, 32], strides = [1, 1]} : vector<2x128xf32> to vector<2x32xf32>
    %360 = math.tanh %359 : vector<2x32xf32>
    %361 = vector.extract_strided_slice %346 {offsets = [0, 96], sizes = [2, 32], strides = [1, 1]} : vector<2x128xf32> to vector<2x32xf32>
    %362 = arith.negf %361 : vector<2x32xf32>
    %363 = math.exp %362 : vector<2x32xf32>
    %cst_74 = arith.constant 1.000000e+00 : f32
    %364 = vector.broadcast %cst_74 : f32 to vector<2x32xf32>
    %365 = arith.addf %364, %363 : vector<2x32xf32>
    %366 = arith.divf %364, %365 : vector<2x32xf32>
    %367 = arith.mulf %358, %340 : vector<2x32xf32>
    %368 = arith.mulf %352, %360 : vector<2x32xf32>
    %369 = arith.addf %367, %368 : vector<2x32xf32>
    %370 = math.tanh %369 : vector<2x32xf32>
    %371 = arith.mulf %366, %370 : vector<2x32xf32>
    %372 = tpu.concatenate %164, %371 in 1 : vector<2x32xf32>, vector<2x32xf32> -> vector<2x64xf32>
    %cst_75 = arith.constant dense<0.000000e+00> : vector<2x128xf32>
    %373 = tpu.matmul %372, %252, %cst_75 {dimension_numbers = #tpu.dot_dimension_numbers<[1], [0], [0], [1], [0, 0, 1, 1], [], []>} : vector<2x64xf32>, vector<64x128xf32>, vector<2x128xf32> -> vector<2x128xf32>
    %374 = vector.broadcast %253 : vector<1x128xf32> to vector<2x128xf32>
    %375 = arith.addf %373, %374 : vector<2x128xf32>
    %376 = vector.extract_strided_slice %375 {offsets = [0, 0], sizes = [2, 32], strides = [1, 1]} : vector<2x128xf32> to vector<2x32xf32>
    %377 = arith.negf %376 : vector<2x32xf32>
    %378 = math.exp %377 : vector<2x32xf32>
    %cst_76 = arith.constant 1.000000e+00 : f32
    %379 = vector.broadcast %cst_76 : f32 to vector<2x32xf32>
    %380 = arith.addf %379, %378 : vector<2x32xf32>
    %381 = arith.divf %379, %380 : vector<2x32xf32>
    %382 = vector.extract_strided_slice %375 {offsets = [0, 32], sizes = [2, 32], strides = [1, 1]} : vector<2x128xf32> to vector<2x32xf32>
    %383 = arith.negf %382 : vector<2x32xf32>
    %384 = math.exp %383 : vector<2x32xf32>
    %cst_77 = arith.constant 1.000000e+00 : f32
    %385 = vector.broadcast %cst_77 : f32 to vector<2x32xf32>
    %386 = arith.addf %385, %384 : vector<2x32xf32>
    %387 = arith.divf %385, %386 : vector<2x32xf32>
    %388 = vector.extract_strided_slice %375 {offsets = [0, 64], sizes = [2, 32], strides = [1, 1]} : vector<2x128xf32> to vector<2x32xf32>
    %389 = math.tanh %388 : vector<2x32xf32>
    %390 = vector.extract_strided_slice %375 {offsets = [0, 96], sizes = [2, 32], strides = [1, 1]} : vector<2x128xf32> to vector<2x32xf32>
    %391 = arith.negf %390 : vector<2x32xf32>
    %392 = math.exp %391 : vector<2x32xf32>
    %cst_78 = arith.constant 1.000000e+00 : f32
    %393 = vector.broadcast %cst_78 : f32 to vector<2x32xf32>
    %394 = arith.addf %393, %392 : vector<2x32xf32>
    %395 = arith.divf %393, %394 : vector<2x32xf32>
    %396 = arith.mulf %387, %369 : vector<2x32xf32>
    %397 = arith.mulf %381, %389 : vector<2x32xf32>
    %398 = arith.addf %396, %397 : vector<2x32xf32>
    %399 = math.tanh %398 : vector<2x32xf32>
    %400 = arith.mulf %395, %399 : vector<2x32xf32>
    %401 = tpu.concatenate %193, %400 in 1 : vector<2x32xf32>, vector<2x32xf32> -> vector<2x64xf32>
    %cst_79 = arith.constant dense<0.000000e+00> : vector<2x128xf32>
    %402 = tpu.matmul %401, %252, %cst_79 {dimension_numbers = #tpu.dot_dimension_numbers<[1], [0], [0], [1], [0, 0, 1, 1], [], []>} : vector<2x64xf32>, vector<64x128xf32>, vector<2x128xf32> -> vector<2x128xf32>
    %403 = vector.broadcast %253 : vector<1x128xf32> to vector<2x128xf32>
    %404 = arith.addf %402, %403 : vector<2x128xf32>
    %405 = vector.extract_strided_slice %404 {offsets = [0, 0], sizes = [2, 32], strides = [1, 1]} : vector<2x128xf32> to vector<2x32xf32>
    %406 = arith.negf %405 : vector<2x32xf32>
    %407 = math.exp %406 : vector<2x32xf32>
    %cst_80 = arith.constant 1.000000e+00 : f32
    %408 = vector.broadcast %cst_80 : f32 to vector<2x32xf32>
    %409 = arith.addf %408, %407 : vector<2x32xf32>
    %410 = arith.divf %408, %409 : vector<2x32xf32>
    %411 = vector.extract_strided_slice %404 {offsets = [0, 32], sizes = [2, 32], strides = [1, 1]} : vector<2x128xf32> to vector<2x32xf32>
    %412 = arith.negf %411 : vector<2x32xf32>
    %413 = math.exp %412 : vector<2x32xf32>
    %cst_81 = arith.constant 1.000000e+00 : f32
    %414 = vector.broadcast %cst_81 : f32 to vector<2x32xf32>
    %415 = arith.addf %414, %413 : vector<2x32xf32>
    %416 = arith.divf %414, %415 : vector<2x32xf32>
    %417 = vector.extract_strided_slice %404 {offsets = [0, 64], sizes = [2, 32], strides = [1, 1]} : vector<2x128xf32> to vector<2x32xf32>
    %418 = math.tanh %417 : vector<2x32xf32>
    %419 = vector.extract_strided_slice %404 {offsets = [0, 96], sizes = [2, 32], strides = [1, 1]} : vector<2x128xf32> to vector<2x32xf32>
    %420 = arith.negf %419 : vector<2x32xf32>
    %421 = math.exp %420 : vector<2x32xf32>
    %cst_82 = arith.constant 1.000000e+00 : f32
    %422 = vector.broadcast %cst_82 : f32 to vector<2x32xf32>
    %423 = arith.addf %422, %421 : vector<2x32xf32>
    %424 = arith.divf %422, %423 : vector<2x32xf32>
    %425 = arith.mulf %416, %398 : vector<2x32xf32>
    %426 = arith.mulf %410, %418 : vector<2x32xf32>
    %427 = arith.addf %425, %426 : vector<2x32xf32>
    %428 = math.tanh %427 : vector<2x32xf32>
    %429 = arith.mulf %424, %428 : vector<2x32xf32>
    %430 = tpu.concatenate %222, %429 in 1 : vector<2x32xf32>, vector<2x32xf32> -> vector<2x64xf32>
    %cst_83 = arith.constant dense<0.000000e+00> : vector<2x128xf32>
    %431 = tpu.matmul %430, %252, %cst_83 {dimension_numbers = #tpu.dot_dimension_numbers<[1], [0], [0], [1], [0, 0, 1, 1], [], []>} : vector<2x64xf32>, vector<64x128xf32>, vector<2x128xf32> -> vector<2x128xf32>
    %432 = vector.broadcast %253 : vector<1x128xf32> to vector<2x128xf32>
    %433 = arith.addf %431, %432 : vector<2x128xf32>
    %434 = vector.extract_strided_slice %433 {offsets = [0, 0], sizes = [2, 32], strides = [1, 1]} : vector<2x128xf32> to vector<2x32xf32>
    %435 = arith.negf %434 : vector<2x32xf32>
    %436 = math.exp %435 : vector<2x32xf32>
    %cst_84 = arith.constant 1.000000e+00 : f32
    %437 = vector.broadcast %cst_84 : f32 to vector<2x32xf32>
    %438 = arith.addf %437, %436 : vector<2x32xf32>
    %439 = arith.divf %437, %438 : vector<2x32xf32>
    %440 = vector.extract_strided_slice %433 {offsets = [0, 32], sizes = [2, 32], strides = [1, 1]} : vector<2x128xf32> to vector<2x32xf32>
    %441 = arith.negf %440 : vector<2x32xf32>
    %442 = math.exp %441 : vector<2x32xf32>
    %cst_85 = arith.constant 1.000000e+00 : f32
    %443 = vector.broadcast %cst_85 : f32 to vector<2x32xf32>
    %444 = arith.addf %443, %442 : vector<2x32xf32>
    %445 = arith.divf %443, %444 : vector<2x32xf32>
    %446 = vector.extract_strided_slice %433 {offsets = [0, 64], sizes = [2, 32], strides = [1, 1]} : vector<2x128xf32> to vector<2x32xf32>
    %447 = math.tanh %446 : vector<2x32xf32>
    %448 = vector.extract_strided_slice %433 {offsets = [0, 96], sizes = [2, 32], strides = [1, 1]} : vector<2x128xf32> to vector<2x32xf32>
    %449 = arith.negf %448 : vector<2x32xf32>
    %450 = math.exp %449 : vector<2x32xf32>
    %cst_86 = arith.constant 1.000000e+00 : f32
    %451 = vector.broadcast %cst_86 : f32 to vector<2x32xf32>
    %452 = arith.addf %451, %450 : vector<2x32xf32>
    %453 = arith.divf %451, %452 : vector<2x32xf32>
    %454 = arith.mulf %445, %427 : vector<2x32xf32>
    %455 = arith.mulf %439, %447 : vector<2x32xf32>
    %456 = arith.addf %454, %455 : vector<2x32xf32>
    %457 = math.tanh %456 : vector<2x32xf32>
    %458 = arith.mulf %453, %457 : vector<2x32xf32>
    %459 = tpu.concatenate %251, %458 in 1 : vector<2x32xf32>, vector<2x32xf32> -> vector<2x64xf32>
    %cst_87 = arith.constant dense<0.000000e+00> : vector<2x128xf32>
    %460 = tpu.matmul %459, %252, %cst_87 {dimension_numbers = #tpu.dot_dimension_numbers<[1], [0], [0], [1], [0, 0, 1, 1], [], []>} : vector<2x64xf32>, vector<64x128xf32>, vector<2x128xf32> -> vector<2x128xf32>
    %461 = vector.broadcast %253 : vector<1x128xf32> to vector<2x128xf32>
    %462 = arith.addf %460, %461 : vector<2x128xf32>
    %463 = vector.extract_strided_slice %462 {offsets = [0, 0], sizes = [2, 32], strides = [1, 1]} : vector<2x128xf32> to vector<2x32xf32>
    %464 = arith.negf %463 : vector<2x32xf32>
    %465 = math.exp %464 : vector<2x32xf32>
    %cst_88 = arith.constant 1.000000e+00 : f32
    %466 = vector.broadcast %cst_88 : f32 to vector<2x32xf32>
    %467 = arith.addf %466, %465 : vector<2x32xf32>
    %468 = arith.divf %466, %467 : vector<2x32xf32>
    %469 = vector.extract_strided_slice %462 {offsets = [0, 32], sizes = [2, 32], strides = [1, 1]} : vector<2x128xf32> to vector<2x32xf32>
    %470 = arith.negf %469 : vector<2x32xf32>
    %471 = math.exp %470 : vector<2x32xf32>
    %cst_89 = arith.constant 1.000000e+00 : f32
    %472 = vector.broadcast %cst_89 : f32 to vector<2x32xf32>
    %473 = arith.addf %472, %471 : vector<2x32xf32>
    %474 = arith.divf %472, %473 : vector<2x32xf32>
    %475 = vector.extract_strided_slice %462 {offsets = [0, 64], sizes = [2, 32], strides = [1, 1]} : vector<2x128xf32> to vector<2x32xf32>
    %476 = math.tanh %475 : vector<2x32xf32>
    %477 = vector.extract_strided_slice %462 {offsets = [0, 96], sizes = [2, 32], strides = [1, 1]} : vector<2x128xf32> to vector<2x32xf32>
    %478 = arith.negf %477 : vector<2x32xf32>
    %479 = math.exp %478 : vector<2x32xf32>
    %cst_90 = arith.constant 1.000000e+00 : f32
    %480 = vector.broadcast %cst_90 : f32 to vector<2x32xf32>
    %481 = arith.addf %480, %479 : vector<2x32xf32>
    %482 = arith.divf %480, %481 : vector<2x32xf32>
    %483 = arith.mulf %474, %456 : vector<2x32xf32>
    %484 = arith.mulf %468, %476 : vector<2x32xf32>
    %485 = arith.addf %483, %484 : vector<2x32xf32>
    %486 = math.tanh %485 : vector<2x32xf32>
    %487 = arith.mulf %482, %486 : vector<2x32xf32>
    %488 = tpu.concatenate %251, %487 in 0 : vector<2x32xf32>, vector<2x32xf32> -> vector<4x32xf32>
    %c0_91 = arith.constant 0 : index
    %c0_92 = arith.constant 0 : index
    %489 = vector.load %arg5[%c0_91, %c0_92] : memref<32x4xf32, #tpu.memory_space<vmem>>, vector<32x4xf32>
    %cst_93 = arith.constant dense<0.000000e+00> : vector<4x4xf32>
    %490 = tpu.matmul %488, %489, %cst_93 {dimension_numbers = #tpu.dot_dimension_numbers<[1], [0], [0], [1], [0, 0, 1, 1], [], []>} : vector<4x32xf32>, vector<32x4xf32>, vector<4x4xf32> -> vector<4x4xf32>
    %c0_94 = arith.constant 0 : index
    %c0_95 = arith.constant 0 : index
    %491 = vector.load %arg6[%c0_94, %c0_95] : memref<1x4xf32, #tpu.memory_space<vmem>>, vector<1x4xf32>
    %492 = vector.broadcast %491 : vector<1x4xf32> to vector<4x4xf32>
    %493 = arith.addf %490, %492 : vector<4x4xf32>
    %c0_96 = arith.constant 0 : index
    %c0_97 = arith.constant 0 : index
    %494 = vector.load %arg7[%c0_96, %c0_97] : memref<4x4xf32, #tpu.memory_space<vmem>>, vector<4x4xf32>
    tpu.vector_store %arg7[%c0_96, %c0_97], %493 {strides = array<i32>} : memref<4x4xf32, #tpu.memory_space<vmem>>, vector<4x4xf32>,
    return
  }
}

</mosaic_0001>

<llo_original>
// kernel: tpu_custom_call.1
$region0: #{tpu_custom_call.1}
  #allocation0 [shape = 'u32[]', space=smem, size = 0x4, offset = 0x4, fixed_abs, tag = 'smem constant byte address 0x4 - core index']
  #allocation1 [shape = 'u32[144,128]{1,0:T(1,128)}', space=vmem, size = 0x12000, scoped, tag = 'internal scratch']
  %s0 = inlined_call_operand.vmem [shape: f32[8,2,4], index: 0, kind: input, shape index: {}]
  %s1 = inlined_call_operand.vmem [shape: f32[36,128], index: 1, kind: input, shape index: {}]
  %s2 = inlined_call_operand.hbm [shape: f32[64,128], index: 2, kind: input, shape index: {}]
  %s3 = inlined_call_operand.vmem [shape: f32[1,128], index: 3, kind: input, shape index: {}]
  %s4 = inlined_call_operand.vmem [shape: f32[1,128], index: 4, kind: input, shape index: {}]
  %s5 = inlined_call_operand.vmem [shape: f32[32,4], index: 5, kind: input, shape index: {}]
  %s6 = inlined_call_operand.vmem [shape: f32[1,4], index: 6, kind: input, shape index: {}]
  %s7 = inlined_call_operand.hbm [shape: f32[4,4], index: 7, kind: output, shape index: {}]
  %s8 = sld [smem:[#allocation0]]
  $region42: #{tpu_custom_call.1} parent=0
    _
  %s10 = ssub.s32 1, %s8
  %s11 = scalar_select 0, %s10, %s8
  $region1: #{tpu_custom_call.1} parent=0
    #allocation2 [shape = 'u8[32768]{0}', space=vmem, size = 0x8000, scoped, tag = 'input window, operand 2, single buffered']
    #allocation3 [shape = 's32[1]{0}', space=sflag, size = 0x4, scoped, tag = 'scoped memory for tpu_custom_call.1']
    #allocation4 [shape = 's32[1]{0}', space=sflag, size = 0x4, scoped, tag = 'scoped memory for tpu_custom_call.1']
    #allocation5 [shape = 'u8[2048]{0}', space=vmem, size = 0x800, scoped, tag = 'output window, operand 0, single buffered']
    %12 = vsyncpa [#allocation3], 0
    %13 = vsyncpa [#allocation4], 0
    // Predicated region
    $region2: #{tpu_custom_call.1} parent=1 // pred_check
      _
    $region3: #{tpu_custom_call.1} parent=1 // pred_check_branch
      %15 = sbr.rel (0) target = $region5
    $region4: #{tpu_custom_call.1} parent=1 // pred_region
      _
    $region5: #{tpu_custom_call.1} parent=1 // pred_fallthru
      _
    // Predicated region
    $region6: #{tpu_custom_call.1} parent=1 // pred_check
      _
    $region7: #{tpu_custom_call.1} parent=1 // pred_check_branch
      %17 = sbr.rel (0) target = $region9
    $region8: #{tpu_custom_call.1} parent=1 // pred_region
      _
    $region9: #{tpu_custom_call.1} parent=1 // pred_fallthru
      _
    // Predicated region
    $region10: #{tpu_custom_call.1} parent=1 // pred_check
      _
    $region11: #{tpu_custom_call.1} parent=1 // pred_check_branch
      %19 = sbr.rel (0) target = $region13
    $region12: #{tpu_custom_call.1} parent=1 // pred_region
      %s21 = ssub.s32 1024, 1024
      %22 = vsyncadd [#allocation3], %s21
      %s23 = sshll.u32 [#allocation2], 4
      %s24 = int_to_ptr.vmem [resolvable:$true] %s23
      %29 = dma.hbm_to_vmem [thread:$0]  %s2, 1024, %s24, [#allocation3], 128, 128, 8
    $region13: #{tpu_custom_call.1} parent=1 // pred_fallthru
      _
    // Predicated region
    $region14: #{tpu_custom_call.1} parent=1 // pred_check
      _
    $region15: #{tpu_custom_call.1} parent=1 // pred_check_branch
      %31 = sbr.rel (0) target = $region17
    $region16: #{tpu_custom_call.1} parent=1 // pred_region
      _
    $region17: #{tpu_custom_call.1} parent=1 // pred_fallthru
      _
    // Predicated region
    $region18: #{tpu_custom_call.1} parent=1 // pred_check
      _
    $region19: #{tpu_custom_call.1} parent=1 // pred_check_branch
      %33 = sbr.rel (0) target = $region21
    $region20: #{tpu_custom_call.1} parent=1 // pred_region
      _
    $region21: #{tpu_custom_call.1} parent=1 // pred_fallthru
      _
    // Predicated region
    $region22: #{tpu_custom_call.1} parent=1 // pred_check
      _
    $region23: #{tpu_custom_call.1} parent=1 // pred_check_branch
      %35 = sbr.rel (0) target = $region25
    $region24: #{tpu_custom_call.1} parent=1 // pred_region
      _
    $region25: #{tpu_custom_call.1} parent=1 // pred_fallthru
      _
    // Predicated region
    $region26: #{tpu_custom_call.1} parent=1 // pred_check
      _
    $region27: #{tpu_custom_call.1} parent=1 // pred_check_branch
      %37 = sbr.rel (0) target = $region29
    $region28: #{tpu_custom_call.1} parent=1 // pred_region
      _
    $region29: #{tpu_custom_call.1} parent=1 // pred_fallthru
      _
    // Predicated region
    $region30: #{tpu_custom_call.1} parent=1 // pred_check
      _
    $region31: #{tpu_custom_call.1} parent=1 // pred_check_branch
      %39 = sbr.rel (0) target = $region33
    $region32: #{tpu_custom_call.1} parent=1 // pred_region
      %40 = dma.done [#allocation3], 1024
    $region33: #{tpu_custom_call.1} parent=1 // pred_fallthru
      _
    %v41 = vld [vmem:[%s0] sm:$0x3]
    %s42 = scalar_lea.vmem %s0, 2
    %v43 = vld [vmem:[%s42] sm:$0x3]
    %s44 = scalar_lea.vmem %s0, 4
    %v45 = vld [vmem:[%s44] sm:$0x3]
    %s46 = scalar_lea.vmem %s0, 6
    %v47 = vld [vmem:[%s46] sm:$0x3]
    %s48 = scalar_lea.vmem %s0, 8
    %v49 = vld [vmem:[%s48] sm:$0x3]
    %s50 = scalar_lea.vmem %s0, 10
    %v51 = vld [vmem:[%s50] sm:$0x3]
    %s52 = scalar_lea.vmem %s0, 12
    %v53 = vld [vmem:[%s52] sm:$0x3]
    %s54 = scalar_lea.vmem %s0, 14
    %v55 = vld [vmem:[%s54] sm:$0x3]
    %v56 = vld [vmem:[%s1] sm:$0xff]
    %v57 = vld [vmem:[%s1 + $0x8] sm:$0xff]
    %v58 = vld [vmem:[%s1 + $0x10] sm:$0xff]
    %v59 = vld [vmem:[%s1 + $0x18] sm:$0xff]
    %v60 = vld [vmem:[%s1 + $0x20] sm:$0xf]
    %v61 = vld [vmem:[%s3] sm:$0x1]
    %vm62 = vcmask 31744
    %v63 = vsel %vm62, %v41, 0.0
    %v65 = vlaneseq
    %v66 = vshrl.u32 %v65, 7
    %v67 = vsub.s32 0, %v66
    %v68 = vrot.slane %v61, %v67
    %vm70 = vcmask 293888
    %v72 = vsel %vm70, %v63, 0
    %vm74 = vcmask 1043456
    %v76 = vsel %vm74, %v60, 0
    %78 = vmatprep.subr.mxu0 0.0
    %79 = vmatpush1.msra.mxu0 0.0
    %80 = vmatprep.subr.mxu0 0.0
    %81 = vmatpush1.msra.mxu0 0.0
    %82 = vmatprep.subr.mxu0 0.0
    %83 = vmatpush1.msra.mxu0 0.0
    %84 = vmatprep.subr.mxu0 0.0
    %85 = vmatpush1.msra.mxu0 0.0
    %86 = vmatprep.subr.mxu0 0.0
    %87 = vmatpush1.msra.mxu0 0.0
    %88 = vmatprep.subr.mxu0 0.0
    %89 = vmatpush1.msra.mxu0 0.0
    %90 = vmatprep.subr.mxu0 0.0
    %91 = vmatpush1.msra.mxu0 0.0
    %92 = vmatprep.subr.mxu0 0.0
    %93 = vmatpush1.msra.mxu0 0.0
    %94 = vmatprep.subr.mxu0 0.0
    %95 = vmatpush1.msra.mxu0 0.0
    %96 = vmatprep.subr.mxu0 0.0
    %97 = vmatpush1.msra.mxu0 0.0
    %98 = vmatprep.subr.mxu0 0.0
    %99 = vmatpush1.msra.mxu0 0.0
    %100 = vmatprep.subr.mxu0 0.0
    %101 = vmatpush1.msra.mxu0 %v76
    %102 = vmatprep.subr.mxu0 0.0
    %103 = vmatpush1.msra.mxu0 %v59
    %104 = vmatprep.subr.mxu0 0.0
    %105 = vmatpush1.msra.mxu0 %v58
    %106 = vmatprep.subr.mxu0 0.0
    %107 = vmatpush1.msra.mxu0 %v57
    %108 = vmatprep.subr.mxu0 0.0
    %109 = vmatpush1.msra.mxu0 %v56
    %110 = vmatprep.subr.mxu0 0.0
    %111 = vmatpush2.msra.mxu0 0.0
    %112 = vmatprep.subr.mxu0 0.0
    %113 = vmatpush2.msra.mxu0 0.0
    %114 = vmatprep.subr.mxu0 0.0
    %115 = vmatpush2.msra.mxu0 0.0
    %116 = vmatprep.subr.mxu0 0.0
    %117 = vmatpush2.msra.mxu0 0.0
    %118 = vmatprep.subr.mxu0 0.0
    %119 = vmatpush2.msra.mxu0 0.0
    %120 = vmatprep.subr.mxu0 0.0
    %121 = vmatpush2.msra.mxu0 0.0
    %122 = vmatprep.subr.mxu0 0.0
    %123 = vmatpush2.msra.mxu0 0.0
    %124 = vmatprep.subr.mxu0 0.0
    %125 = vmatpush2.msra.mxu0 0.0
    %126 = vmatprep.subr.mxu0 0.0
    %127 = vmatpush2.msra.mxu0 0.0
    %128 = vmatprep.subr.mxu0 0.0
    %129 = vmatpush2.msra.mxu0 0.0
    %130 = vmatprep.subr.mxu0 0.0
    %131 = vmatpush2.msra.mxu0 0.0
    %132 = vmatprep.subr.mxu0 0.0
    %133 = vmatpush2.msra.mxu0 0.0
    %134 = vmatprep.subr.mxu0 0.0
    %135 = vmatpush2.msra.mxu0 0.0
    %136 = vmatprep.subr.mxu0 0.0
    %137 = vmatpush2.msra.mxu0 0.0
    %138 = vmatprep.subr.mxu0 0.0
    %139 = vmatpush2.msra.mxu0 0.0
    %140 = vmatprep.subr.mxu0 0.0
    %141 = vmatpush2.msra.mxu0 0.0
    %142 = vmatprep.mubr.f32.mxu0 0.0
    %143 = vmatmul.mubr.f32.gmra.mxu0 %v72
    %v144 = vpop.f32.mrf.mxu0
    %v145 = vadd.f32 %v68, %v144
    %v146 = vpop.f32.mrf.mxu0
    %147 = vdwg.mxu0
    %v148 = vxor.u32 %v145, 2147483648
    %v149 = vmul.f32 %v148, 1.442695
    %v150 = vpow.pop %v149
    %v151 = vadd.f32 %v150, 1.0
    %v152 = vrcp.pop %v151
    %v153 = vmul.f32 1.0, %v152
    %v154 = vtanh.pop %v145
    %v155 = vmul.f32 %v153, 0.0
    %157 = vrot.lane.b32.xlu0 %v154, 64
    %v158 = vpop.permute.xlu0 %157
    %v160 = vmul.f32 %v153, %v158
    %162 = vrot.lane.b32.xlu0 %v160, 32
    %v163 = vpop.permute.xlu0 %162
    %v165 = vadd.f32 %v155, %v163
    %v166 = vtanh.pop %v165
    %168 = vrot.lane.b32.xlu0 %v166, 64
    %v169 = vpop.permute.xlu0 %168
    %v171 = vmul.f32 %v153, %v169
    %173 = vrot.lane.b32.xlu0 %v171, 36
    %v174 = vpop.permute.xlu0 %173
    %v176 = vsel %vm62, %v43, %v174
    %v178 = vsel %vm70, %v176, 0
    %180 = vmatprep.subr.mxu0 0.0
    %181 = vmatpush1.msra.mxu0 0.0
    %182 = vmatprep.subr.mxu0 0.0
    %183 = vmatpush1.msra.mxu0 0.0
    %184 = vmatprep.subr.mxu0 0.0
    %185 = vmatpush1.msra.mxu0 0.0
    %186 = vmatprep.subr.mxu0 0.0
    %187 = vmatpush1.msra.mxu0 0.0
    %188 = vmatprep.subr.mxu0 0.0
    %189 = vmatpush1.msra.mxu0 0.0
    %190 = vmatprep.subr.mxu0 0.0
    %191 = vmatpush1.msra.mxu0 0.0
    %192 = vmatprep.subr.mxu0 0.0
    %193 = vmatpush1.msra.mxu0 0.0
    %194 = vmatprep.subr.mxu0 0.0
    %195 = vmatpush1.msra.mxu0 0.0
    %196 = vmatprep.subr.mxu0 0.0
    %197 = vmatpush1.msra.mxu0 0.0
    %198 = vmatprep.subr.mxu0 0.0
    %199 = vmatpush1.msra.mxu0 0.0
    %200 = vmatprep.subr.mxu0 0.0
    %201 = vmatpush1.msra.mxu0 0.0
    %202 = vmatprep.subr.mxu0 0.0
    %203 = vmatpush1.msra.mxu0 %v76
    %204 = vmatprep.subr.mxu0 0.0
    %205 = vmatpush1.msra.mxu0 %v59
    %206 = vmatprep.subr.mxu0 0.0
    %207 = vmatpush1.msra.mxu0 %v58
    %208 = vmatprep.subr.mxu0 0.0
    %209 = vmatpush1.msra.mxu0 %v57
    %210 = vmatprep.subr.mxu0 0.0
    %211 = vmatpush1.msra.mxu0 %v56
    %212 = vmatprep.subr.mxu0 0.0
    %213 = vmatpush2.msra.mxu0 0.0
    %214 = vmatprep.subr.mxu0 0.0
    %215 = vmatpush2.msra.mxu0 0.0
    %216 = vmatprep.subr.mxu0 0.0
    %217 = vmatpush2.msra.mxu0 0.0
    %218 = vmatprep.subr.mxu0 0.0
    %219 = vmatpush2.msra.mxu0 0.0
    %220 = vmatprep.subr.mxu0 0.0
    %221 = vmatpush2.msra.mxu0 0.0
    %222 = vmatprep.subr.mxu0 0.0
    %223 = vmatpush2.msra.mxu0 0.0
    %224 = vmatprep.subr.mxu0 0.0
    %225 = vmatpush2.msra.mxu0 0.0
    %226 = vmatprep.subr.mxu0 0.0
    %227 = vmatpush2.msra.mxu0 0.0
    %228 = vmatprep.subr.mxu0 0.0
    %229 = vmatpush2.msra.mxu0 0.0
    %230 = vmatprep.subr.mxu0 0.0
    %231 = vmatpush2.msra.mxu0 0.0
    %232 = vmatprep.subr.mxu0 0.0
    %233 = vmatpush2.msra.mxu0 0.0
    %234 = vmatprep.subr.mxu0 0.0
    %235 = vmatpush2.msra.mxu0 0.0
    %236 = vmatprep.subr.mxu0 0.0
    %237 = vmatpush2.msra.mxu0 0.0
    %238 = vmatprep.subr.mxu0 0.0
    %239 = vmatpush2.msra.mxu0 0.0
    %240 = vmatprep.subr.mxu0 0.0
    %241 = vmatpush2.msra.mxu0 0.0
    %242 = vmatprep.subr.mxu0 0.0
    %243 = vmatpush2.msra.mxu0 0.0
    %244 = vmatprep.mubr.f32.mxu0 0.0
    %245 = vmatmul.mubr.f32.gmra.mxu0 %v178
    %v246 = vpop.f32.mrf.mxu0
    %v247 = vadd.f32 %v68, %v246
    %v248 = vpop.f32.mrf.mxu0
    %249 = vdwg.mxu0
    %v250 = vxor.u32 %v247, 2147483648
    %v251 = vmul.f32 %v250, 1.442695
    %v252 = vpow.pop %v251
    %v253 = vadd.f32 %v252, 1.0
    %v254 = vrcp.pop %v253
    %v255 = vmul.f32 1.0, %v254
    %v256 = vtanh.pop %v247
    %v257 = vmul.f32 %v255, %v165
    %259 = vrot.lane.b32.xlu0 %v256, 64
    %v260 = vpop.permute.xlu0 %259
    %v262 = vmul.f32 %v255, %v260
    %264 = vrot.lane.b32.xlu0 %v262, 32
    %v265 = vpop.permute.xlu0 %264
    %v267 = vadd.f32 %v257, %v265
    %v268 = vtanh.pop %v267
    %270 = vrot.lane.b32.xlu0 %v268, 64
    %v271 = vpop.permute.xlu0 %270
    %v273 = vmul.f32 %v255, %v271
    %275 = vrot.lane.b32.xlu0 %v273, 36
    %v276 = vpop.permute.xlu0 %275
    %v278 = vsel %vm62, %v45, %v276
    %v280 = vsel %vm70, %v278, 0
    %282 = vmatprep.subr.mxu0 0.0
    %283 = vmatpush1.msra.mxu0 0.0
    %284 = vmatprep.subr.mxu0 0.0
    %285 = vmatpush1.msra.mxu0 0.0
    %286 = vmatprep.subr.mxu0 0.0
    %287 = vmatpush1.msra.mxu0 0.0
    %288 = vmatprep.subr.mxu0 0.0
    %289 = vmatpush1.msra.mxu0 0.0
    %290 = vmatprep.subr.mxu0 0.0
    %291 = vmatpush1.msra.mxu0 0.0
    %292 = vmatprep.subr.mxu0 0.0
    %293 = vmatpush1.msra.mxu0 0.0
    %294 = vmatprep.subr.mxu0 0.0
    %295 = vmatpush1.msra.mxu0 0.0
    %296 = vmatprep.subr.mxu0 0.0
    %297 = vmatpush1.msra.mxu0 0.0
    %298 = vmatprep.subr.mxu0 0.0
    %299 = vmatpush1.msra.mxu0 0.0
    %300 = vmatprep.subr.mxu0 0.0
    %301 = vmatpush1.msra.mxu0 0.0
    %302 = vmatprep.subr.mxu0 0.0
    %303 = vmatpush1.msra.mxu0 0.0
    %304 = vmatprep.subr.mxu0 0.0
    %305 = vmatpush1.msra.mxu0 %v76
    %306 = vmatprep.subr.mxu0 0.0
    %307 = vmatpush1.msra.mxu0 %v59
    %308 = vmatprep.subr.mxu0 0.0
    %309 = vmatpush1.msra.mxu0 %v58
    %310 = vmatprep.subr.mxu0 0.0
    %311 = vmatpush1.msra.mxu0 %v57
    %312 = vmatprep.subr.mxu0 0.0
    %313 = vmatpush1.msra.mxu0 %v56
    %314 = vmatprep.subr.mxu0 0.0
    %315 = vmatpush2.msra.mxu0 0.0
    %316 = vmatprep.subr.mxu0 0.0
    %317 = vmatpush2.msra.mxu0 0.0
    %318 = vmatprep.subr.mxu0 0.0
    %319 = vmatpush2.msra.mxu0 0.0
    %320 = vmatprep.subr.mxu0 0.0
    %321 = vmatpush2.msra.mxu0 0.0
    %322 = vmatprep.subr.mxu0 0.0
    %323 = vmatpush2.msra.mxu0 0.0
    %324 = vmatprep.subr.mxu0 0.0
    %325 = vmatpush2.msra.mxu0 0.0
    %326 = vmatprep.subr.mxu0 0.0
    %327 = vmatpush2.msra.mxu0 0.0
    %328 = vmatprep.subr.mxu0 0.0
    %329 = vmatpush2.msra.mxu0 0.0
    %330 = vmatprep.subr.mxu0 0.0
    %331 = vmatpush2.msra.mxu0 0.0
    %332 = vmatprep.subr.mxu0 0.0
    %333 = vmatpush2.msra.mxu0 0.0
    %334 = vmatprep.subr.mxu0 0.0
    %335 = vmatpush2.msra.mxu0 0.0
    %336 = vmatprep.subr.mxu0 0.0
    %337 = vmatpush2.msra.mxu0 0.0
    %338 = vmatprep.subr.mxu0 0.0
    %339 = vmatpush2.msra.mxu0 0.0
    %340 = vmatprep.subr.mxu0 0.0
    %341 = vmatpush2.msra.mxu0 0.0
    %342 = vmatprep.subr.mxu0 0.0
    %343 = vmatpush2.msra.mxu0 0.0
    %344 = vmatprep.subr.mxu0 0.0
    %345 = vmatpush2.msra.mxu0 0.0
    %346 = vmatprep.mubr.f32.mxu0 0.0
    %347 = vmatmul.mubr.f32.gmra.mxu0 %v280
    %v348 = vpop.f32.mrf.mxu0
    %v349 = vadd.f32 %v68, %v348
    %v350 = vpop.f32.mrf.mxu0
    %351 = vdwg.mxu0
    %v352 = vxor.u32 %v349, 2147483648
    %v353 = vmul.f32 %v352, 1.442695
    %v354 = vpow.pop %v353
    %v355 = vadd.f32 %v354, 1.0
    %v356 = vrcp.pop %v355
    %v357 = vmul.f32 1.0, %v356
    %v358 = vtanh.pop %v349
    %v359 = vmul.f32 %v357, %v267
    %361 = vrot.lane.b32.xlu0 %v358, 64
    %v362 = vpop.permute.xlu0 %361
    %v364 = vmul.f32 %v357, %v362
    %366 = vrot.lane.b32.xlu0 %v364, 32
    %v367 = vpop.permute.xlu0 %366
    %v369 = vadd.f32 %v359, %v367
    %v370 = vtanh.pop %v369
    %372 = vrot.lane.b32.xlu0 %v370, 64
    %v373 = vpop.permute.xlu0 %372
    %v375 = vmul.f32 %v357, %v373
    %377 = vrot.lane.b32.xlu0 %v375, 36
    %v378 = vpop.permute.xlu0 %377
    %v380 = vsel %vm62, %v47, %v378
    %v382 = vsel %vm70, %v380, 0
    %384 = vmatprep.subr.mxu0 0.0
    %385 = vmatpush1.msra.mxu0 0.0
    %386 = vmatprep.subr.mxu0 0.0
    %387 = vmatpush1.msra.mxu0 0.0
    %388 = vmatprep.subr.mxu0 0.0
    %389 = vmatpush1.msra.mxu0 0.0
    %390 = vmatprep.subr.mxu0 0.0
    %391 = vmatpush1.msra.mxu0 0.0
    %392 = vmatprep.subr.mxu0 0.0
    %393 = vmatpush1.msra.mxu0 0.0
    %394 = vmatprep.subr.mxu0 0.0
    %395 = vmatpush1.msra.mxu0 0.0
    %396 = vmatprep.subr.mxu0 0.0
    %397 = vmatpush1.msra.mxu0 0.0
    %398 = vmatprep.subr.mxu0 0.0
    %399 = vmatpush1.msra.mxu0 0.0
    %400 = vmatprep.subr.mxu0 0.0
    %401 = vmatpush1.msra.mxu0 0.0
    %402 = vmatprep.subr.mxu0 0.0
    %403 = vmatpush1.msra.mxu0 0.0
    %404 = vmatprep.subr.mxu0 0.0
    %405 = vmatpush1.msra.mxu0 0.0
    %406 = vmatprep.subr.mxu0 0.0
    %407 = vmatpush1.msra.mxu0 %v76
    %408 = vmatprep.subr.mxu0 0.0
    %409 = vmatpush1.msra.mxu0 %v59
    %410 = vmatprep.subr.mxu0 0.0
    %411 = vmatpush1.msra.mxu0 %v58
    %412 = vmatprep.subr.mxu0 0.0
    %413 = vmatpush1.msra.mxu0 %v57
    %414 = vmatprep.subr.mxu0 0.0
    %415 = vmatpush1.msra.mxu0 %v56
    %416 = vmatprep.subr.mxu0 0.0
    %417 = vmatpush2.msra.mxu0 0.0
    %418 = vmatprep.subr.mxu0 0.0
    %419 = vmatpush2.msra.mxu0 0.0
    %420 = vmatprep.subr.mxu0 0.0
    %421 = vmatpush2.msra.mxu0 0.0
    %422 = vmatprep.subr.mxu0 0.0
    %423 = vmatpush2.msra.mxu0 0.0
    %424 = vmatprep.subr.mxu0 0.0
    %425 = vmatpush2.msra.mxu0 0.0
    %426 = vmatprep.subr.mxu0 0.0
    %427 = vmatpush2.msra.mxu0 0.0
    %428 = vmatprep.subr.mxu0 0.0
    %429 = vmatpush2.msra.mxu0 0.0
    %430 = vmatprep.subr.mxu0 0.0
    %431 = vmatpush2.msra.mxu0 0.0
    %432 = vmatprep.subr.mxu0 0.0
    %433 = vmatpush2.msra.mxu0 0.0
    %434 = vmatprep.subr.mxu0 0.0
    %435 = vmatpush2.msra.mxu0 0.0
    %436 = vmatprep.subr.mxu0 0.0
    %437 = vmatpush2.msra.mxu0 0.0
    %438 = vmatprep.subr.mxu0 0.0
    %439 = vmatpush2.msra.mxu0 0.0
    %440 = vmatprep.subr.mxu0 0.0
    %441 = vmatpush2.msra.mxu0 0.0
    %442 = vmatprep.subr.mxu0 0.0
    %443 = vmatpush2.msra.mxu0 0.0
    %444 = vmatprep.subr.mxu0 0.0
    %445 = vmatpush2.msra.mxu0 0.0
    %446 = vmatprep.subr.mxu0 0.0
    %447 = vmatpush2.msra.mxu0 0.0
    %448 = vmatprep.mubr.f32.mxu0 0.0
    %449 = vmatmul.mubr.f32.gmra.mxu0 %v382
    %v450 = vpop.f32.mrf.mxu0
    %v451 = vadd.f32 %v68, %v450
    %v452 = vpop.f32.mrf.mxu0
    %453 = vdwg.mxu0
    %v454 = vxor.u32 %v451, 2147483648
    %v455 = vmul.f32 %v454, 1.442695
    %v456 = vpow.pop %v455
    %v457 = vadd.f32 %v456, 1.0
    %v458 = vrcp.pop %v457
    %v459 = vmul.f32 1.0, %v458
    %v460 = vtanh.pop %v451
    %v461 = vmul.f32 %v459, %v369
    %463 = vrot.lane.b32.xlu0 %v460, 64
    %v464 = vpop.permute.xlu0 %463
    %v466 = vmul.f32 %v459, %v464
    %468 = vrot.lane.b32.xlu0 %v466, 32
    %v469 = vpop.permute.xlu0 %468
    %v471 = vadd.f32 %v461, %v469
    %v472 = vtanh.pop %v471
    %474 = vrot.lane.b32.xlu0 %v472, 64
    %v475 = vpop.permute.xlu0 %474
    %v477 = vmul.f32 %v459, %v475
    %479 = vrot.lane.b32.xlu0 %v477, 36
    %v480 = vpop.permute.xlu0 %479
    %v482 = vsel %vm62, %v49, %v480
    %v484 = vsel %vm70, %v482, 0
    %486 = vmatprep.subr.mxu0 0.0
    %487 = vmatpush1.msra.mxu0 0.0
    %488 = vmatprep.subr.mxu0 0.0
    %489 = vmatpush1.msra.mxu0 0.0
    %490 = vmatprep.subr.mxu0 0.0
    %491 = vmatpush1.msra.mxu0 0.0
    %492 = vmatprep.subr.mxu0 0.0
    %493 = vmatpush1.msra.mxu0 0.0
    %494 = vmatprep.subr.mxu0 0.0
    %495 = vmatpush1.msra.mxu0 0.0
    %496 = vmatprep.subr.mxu0 0.0
    %497 = vmatpush1.msra.mxu0 0.0
    %498 = vmatprep.subr.mxu0 0.0
    %499 = vmatpush1.msra.mxu0 0.0
    %500 = vmatprep.subr.mxu0 0.0
    %501 = vmatpush1.msra.mxu0 0.0
    %502 = vmatprep.subr.mxu0 0.0
    %503 = vmatpush1.msra.mxu0 0.0
    %504 = vmatprep.subr.mxu0 0.0
    %505 = vmatpush1.msra.mxu0 0.0
    %506 = vmatprep.subr.mxu0 0.0
    %507 = vmatpush1.msra.mxu0 0.0
    %508 = vmatprep.subr.mxu0 0.0
    %509 = vmatpush1.msra.mxu0 %v76
    %510 = vmatprep.subr.mxu0 0.0
    %511 = vmatpush1.msra.mxu0 %v59
    %512 = vmatprep.subr.mxu0 0.0
    %513 = vmatpush1.msra.mxu0 %v58
    %514 = vmatprep.subr.mxu0 0.0
    %515 = vmatpush1.msra.mxu0 %v57
    %516 = vmatprep.subr.mxu0 0.0
    %517 = vmatpush1.msra.mxu0 %v56
    %518 = vmatprep.subr.mxu0 0.0
    %519 = vmatpush2.msra.mxu0 0.0
    %520 = vmatprep.subr.mxu0 0.0
    %521 = vmatpush2.msra.mxu0 0.0
    %522 = vmatprep.subr.mxu0 0.0
    %523 = vmatpush2.msra.mxu0 0.0
    %524 = vmatprep.subr.mxu0 0.0
    %525 = vmatpush2.msra.mxu0 0.0
    %526 = vmatprep.subr.mxu0 0.0
    %527 = vmatpush2.msra.mxu0 0.0
    %528 = vmatprep.subr.mxu0 0.0
    %529 = vmatpush2.msra.mxu0 0.0
    %530 = vmatprep.subr.mxu0 0.0
    %531 = vmatpush2.msra.mxu0 0.0
    %532 = vmatprep.subr.mxu0 0.0
    %533 = vmatpush2.msra.mxu0 0.0
    %534 = vmatprep.subr.mxu0 0.0
    %535 = vmatpush2.msra.mxu0 0.0
    %536 = vmatprep.subr.mxu0 0.0
    %537 = vmatpush2.msra.mxu0 0.0
    %538 = vmatprep.subr.mxu0 0.0
    %539 = vmatpush2.msra.mxu0 0.0
    %540 = vmatprep.subr.mxu0 0.0
    %541 = vmatpush2.msra.mxu0 0.0
    %542 = vmatprep.subr.mxu0 0.0
    %543 = vmatpush2.msra.mxu0 0.0
    %544 = vmatprep.subr.mxu0 0.0
    %545 = vmatpush2.msra.mxu0 0.0
    %546 = vmatprep.subr.mxu0 0.0
    %547 = vmatpush2.msra.mxu0 0.0
    %548 = vmatprep.subr.mxu0 0.0
    %549 = vmatpush2.msra.mxu0 0.0
    %550 = vmatprep.mubr.f32.mxu0 0.0
    %551 = vmatmul.mubr.f32.gmra.mxu0 %v484
    %v552 = vpop.f32.mrf.mxu0
    %v553 = vadd.f32 %v68, %v552
    %v554 = vpop.f32.mrf.mxu0
    %555 = vdwg.mxu0
    %v556 = vxor.u32 %v553, 2147483648
    %v557 = vmul.f32 %v556, 1.442695
    %v558 = vpow.pop %v557
    %v559 = vadd.f32 %v558, 1.0
    %v560 = vrcp.pop %v559
    %v561 = vmul.f32 1.0, %v560
    %v562 = vtanh.pop %v553
    %v563 = vmul.f32 %v561, %v471
    %565 = vrot.lane.b32.xlu0 %v562, 64
    %v566 = vpop.permute.xlu0 %565
    %v568 = vmul.f32 %v561, %v566
    %570 = vrot.lane.b32.xlu0 %v568, 32
    %v571 = vpop.permute.xlu0 %570
    %v573 = vadd.f32 %v563, %v571
    %v574 = vtanh.pop %v573
    %576 = vrot.lane.b32.xlu0 %v574, 64
    %v577 = vpop.permute.xlu0 %576
    %v579 = vmul.f32 %v561, %v577
    %581 = vrot.lane.b32.xlu0 %v579, 36
    %v582 = vpop.permute.xlu0 %581
    %v584 = vsel %vm62, %v51, %v582
    %v586 = vsel %vm70, %v584, 0
    %588 = vmatprep.subr.mxu0 0.0
    %589 = vmatpush1.msra.mxu0 0.0
    %590 = vmatprep.subr.mxu0 0.0
    %591 = vmatpush1.msra.mxu0 0.0
    %592 = vmatprep.subr.mxu0 0.0
    %593 = vmatpush1.msra.mxu0 0.0
    %594 = vmatprep.subr.mxu0 0.0
    %595 = vmatpush1.msra.mxu0 0.0
    %596 = vmatprep.subr.mxu0 0.0
    %597 = vmatpush1.msra.mxu0 0.0
    %598 = vmatprep.subr.mxu0 0.0
    %599 = vmatpush1.msra.mxu0 0.0
    %600 = vmatprep.subr.mxu0 0.0
    %601 = vmatpush1.msra.mxu0 0.0
    %602 = vmatprep.subr.mxu0 0.0
    %603 = vmatpush1.msra.mxu0 0.0
    %604 = vmatprep.subr.mxu0 0.0
    %605 = vmatpush1.msra.mxu0 0.0
    %606 = vmatprep.subr.mxu0 0.0
    %607 = vmatpush1.msra.mxu0 0.0
    %608 = vmatprep.subr.mxu0 0.0
    %609 = vmatpush1.msra.mxu0 0.0
    %610 = vmatprep.subr.mxu0 0.0
    %611 = vmatpush1.msra.mxu0 %v76
    %612 = vmatprep.subr.mxu0 0.0
    %613 = vmatpush1.msra.mxu0 %v59
    %614 = vmatprep.subr.mxu0 0.0
    %615 = vmatpush1.msra.mxu0 %v58
    %616 = vmatprep.subr.mxu0 0.0
    %617 = vmatpush1.msra.mxu0 %v57
    %618 = vmatprep.subr.mxu0 0.0
    %619 = vmatpush1.msra.mxu0 %v56
    %620 = vmatprep.subr.mxu0 0.0
    %621 = vmatpush2.msra.mxu0 0.0
    %622 = vmatprep.subr.mxu0 0.0
    %623 = vmatpush2.msra.mxu0 0.0
    %624 = vmatprep.subr.mxu0 0.0
    %625 = vmatpush2.msra.mxu0 0.0
    %626 = vmatprep.subr.mxu0 0.0
    %627 = vmatpush2.msra.mxu0 0.0
    %628 = vmatprep.subr.mxu0 0.0
    %629 = vmatpush2.msra.mxu0 0.0
    %630 = vmatprep.subr.mxu0 0.0
    %631 = vmatpush2.msra.mxu0 0.0
    %632 = vmatprep.subr.mxu0 0.0
    %633 = vmatpush2.msra.mxu0 0.0
    %634 = vmatprep.subr.mxu0 0.0
    %635 = vmatpush2.msra.mxu0 0.0
    %636 = vmatprep.subr.mxu0 0.0
    %637 = vmatpush2.msra.mxu0 0.0
    %638 = vmatprep.subr.mxu0 0.0
    %639 = vmatpush2.msra.mxu0 0.0
    %640 = vmatprep.subr.mxu0 0.0
    %641 = vmatpush2.msra.mxu0 0.0
    %642 = vmatprep.subr.mxu0 0.0
    %643 = vmatpush2.msra.mxu0 0.0
    %644 = vmatprep.subr.mxu0 0.0
    %645 = vmatpush2.msra.mxu0 0.0
    %646 = vmatprep.subr.mxu0 0.0
    %647 = vmatpush2.msra.mxu0 0.0
    %648 = vmatprep.subr.mxu0 0.0
    %649 = vmatpush2.msra.mxu0 0.0
    %650 = vmatprep.subr.mxu0 0.0
    %651 = vmatpush2.msra.mxu0 0.0
    %652 = vmatprep.mubr.f32.mxu0 0.0
    %653 = vmatmul.mubr.f32.gmra.mxu0 %v586
    %v654 = vpop.f32.mrf.mxu0
    %v655 = vadd.f32 %v68, %v654
    %v656 = vpop.f32.mrf.mxu0
    %657 = vdwg.mxu0
    %v658 = vxor.u32 %v655, 2147483648
    %v659 = vmul.f32 %v658, 1.442695
    %v660 = vpow.pop %v659
    %v661 = vadd.f32 %v660, 1.0
    %v662 = vrcp.pop %v661
    %v663 = vmul.f32 1.0, %v662
    %v664 = vtanh.pop %v655
    %v665 = vmul.f32 %v663, %v573
    %667 = vrot.lane.b32.xlu0 %v664, 64
    %v668 = vpop.permute.xlu0 %667
    %v670 = vmul.f32 %v663, %v668
    %672 = vrot.lane.b32.xlu0 %v670, 32
    %v673 = vpop.permute.xlu0 %672
    %v675 = vadd.f32 %v665, %v673
    %v676 = vtanh.pop %v675
    %678 = vrot.lane.b32.xlu0 %v676, 64
    %v679 = vpop.permute.xlu0 %678
    %v681 = vmul.f32 %v663, %v679
    %683 = vrot.lane.b32.xlu0 %v681, 36
    %v684 = vpop.permute.xlu0 %683
    %v686 = vsel %vm62, %v53, %v684
    %v688 = vsel %vm70, %v686, 0
    %690 = vmatprep.subr.mxu0 0.0
    %691 = vmatpush1.msra.mxu0 0.0
    %692 = vmatprep.subr.mxu0 0.0
    %693 = vmatpush1.msra.mxu0 0.0
    %694 = vmatprep.subr.mxu0 0.0
    %695 = vmatpush1.msra.mxu0 0.0
    %696 = vmatprep.subr.mxu0 0.0
    %697 = vmatpush1.msra.mxu0 0.0
    %698 = vmatprep.subr.mxu0 0.0
    %699 = vmatpush1.msra.mxu0 0.0
    %700 = vmatprep.subr.mxu0 0.0
    %701 = vmatpush1.msra.mxu0 0.0
    %702 = vmatprep.subr.mxu0 0.0
    %703 = vmatpush1.msra.mxu0 0.0
    %704 = vmatprep.subr.mxu0 0.0
    %705 = vmatpush1.msra.mxu0 0.0
    %706 = vmatprep.subr.mxu0 0.0
    %707 = vmatpush1.msra.mxu0 0.0
    %708 = vmatprep.subr.mxu0 0.0
    %709 = vmatpush1.msra.mxu0 0.0
    %710 = vmatprep.subr.mxu0 0.0
    %711 = vmatpush1.msra.mxu0 0.0
    %712 = vmatprep.subr.mxu0 0.0
    %713 = vmatpush1.msra.mxu0 %v76
    %714 = vmatprep.subr.mxu0 0.0
    %715 = vmatpush1.msra.mxu0 %v59
    %716 = vmatprep.subr.mxu0 0.0
    %717 = vmatpush1.msra.mxu0 %v58
    %718 = vmatprep.subr.mxu0 0.0
    %719 = vmatpush1.msra.mxu0 %v57
    %720 = vmatprep.subr.mxu0 0.0
    %721 = vmatpush1.msra.mxu0 %v56
    %722 = vmatprep.subr.mxu0 0.0
    %723 = vmatpush2.msra.mxu0 0.0
    %724 = vmatprep.subr.mxu0 0.0
    %725 = vmatpush2.msra.mxu0 0.0
    %726 = vmatprep.subr.mxu0 0.0
    %727 = vmatpush2.msra.mxu0 0.0
    %728 = vmatprep.subr.mxu0 0.0
    %729 = vmatpush2.msra.mxu0 0.0
    %730 = vmatprep.subr.mxu0 0.0
    %731 = vmatpush2.msra.mxu0 0.0
    %732 = vmatprep.subr.mxu0 0.0
    %733 = vmatpush2.msra.mxu0 0.0
    %734 = vmatprep.subr.mxu0 0.0
    %735 = vmatpush2.msra.mxu0 0.0
    %736 = vmatprep.subr.mxu0 0.0
    %737 = vmatpush2.msra.mxu0 0.0
    %738 = vmatprep.subr.mxu0 0.0
    %739 = vmatpush2.msra.mxu0 0.0
    %740 = vmatprep.subr.mxu0 0.0
    %741 = vmatpush2.msra.mxu0 0.0
    %742 = vmatprep.subr.mxu0 0.0
    %743 = vmatpush2.msra.mxu0 0.0
    %744 = vmatprep.subr.mxu0 0.0
    %745 = vmatpush2.msra.mxu0 0.0
    %746 = vmatprep.subr.mxu0 0.0
    %747 = vmatpush2.msra.mxu0 0.0
    %748 = vmatprep.subr.mxu0 0.0
    %749 = vmatpush2.msra.mxu0 0.0
    %750 = vmatprep.subr.mxu0 0.0
    %751 = vmatpush2.msra.mxu0 0.0
    %752 = vmatprep.subr.mxu0 0.0
    %753 = vmatpush2.msra.mxu0 0.0
    %754 = vmatprep.mubr.f32.mxu0 0.0
    %755 = vmatmul.mubr.f32.gmra.mxu0 %v688
    %v756 = vpop.f32.mrf.mxu0
    %v757 = vadd.f32 %v68, %v756
    %v758 = vpop.f32.mrf.mxu0
    %759 = vdwg.mxu0
    %v760 = vxor.u32 %v757, 2147483648
    %v761 = vmul.f32 %v760, 1.442695
    %v762 = vpow.pop %v761
    %v763 = vadd.f32 %v762, 1.0
    %v764 = vrcp.pop %v763
    %v765 = vmul.f32 1.0, %v764
    %v766 = vtanh.pop %v757
    %v767 = vmul.f32 %v765, %v675
    %769 = vrot.lane.b32.xlu0 %v766, 64
    %v770 = vpop.permute.xlu0 %769
    %v772 = vmul.f32 %v765, %v770
    %774 = vrot.lane.b32.xlu0 %v772, 32
    %v775 = vpop.permute.xlu0 %774
    %v777 = vadd.f32 %v767, %v775
    %v778 = vtanh.pop %v777
    %780 = vrot.lane.b32.xlu0 %v778, 64
    %v781 = vpop.permute.xlu0 %780
    %v783 = vmul.f32 %v765, %v781
    %785 = vrot.lane.b32.xlu0 %v783, 36
    %v786 = vpop.permute.xlu0 %785
    %v788 = vsel %vm62, %v55, %v786
    %v790 = vsel %vm70, %v788, 0
    %792 = vmatprep.subr.mxu0 0.0
    %793 = vmatpush1.msra.mxu0 0.0
    %794 = vmatprep.subr.mxu0 0.0
    %795 = vmatpush1.msra.mxu0 0.0
    %796 = vmatprep.subr.mxu0 0.0
    %797 = vmatpush1.msra.mxu0 0.0
    %798 = vmatprep.subr.mxu0 0.0
    %799 = vmatpush1.msra.mxu0 0.0
    %800 = vmatprep.subr.mxu0 0.0
    %801 = vmatpush1.msra.mxu0 0.0
    %802 = vmatprep.subr.mxu0 0.0
    %803 = vmatpush1.msra.mxu0 0.0
    %804 = vmatprep.subr.mxu0 0.0
    %805 = vmatpush1.msra.mxu0 0.0
    %806 = vmatprep.subr.mxu0 0.0
    %807 = vmatpush1.msra.mxu0 0.0
    %808 = vmatprep.subr.mxu0 0.0
    %809 = vmatpush1.msra.mxu0 0.0
    %810 = vmatprep.subr.mxu0 0.0
    %811 = vmatpush1.msra.mxu0 0.0
    %812 = vmatprep.subr.mxu0 0.0
    %813 = vmatpush1.msra.mxu0 0.0
    %814 = vmatprep.subr.mxu0 0.0
    %815 = vmatpush1.msra.mxu0 %v76
    %816 = vmatprep.subr.mxu0 0.0
    %817 = vmatpush1.msra.mxu0 %v59
    %818 = vmatprep.subr.mxu0 0.0
    %819 = vmatpush1.msra.mxu0 %v58
    %820 = vmatprep.subr.mxu0 0.0
    %821 = vmatpush1.msra.mxu0 %v57
    %822 = vmatprep.subr.mxu0 0.0
    %823 = vmatpush1.msra.mxu0 %v56
    %824 = vmatprep.subr.mxu0 0.0
    %825 = vmatpush2.msra.mxu0 0.0
    %826 = vmatprep.subr.mxu0 0.0
    %827 = vmatpush2.msra.mxu0 0.0
    %828 = vmatprep.subr.mxu0 0.0
    %829 = vmatpush2.msra.mxu0 0.0
    %830 = vmatprep.subr.mxu0 0.0
    %831 = vmatpush2.msra.mxu0 0.0
    %832 = vmatprep.subr.mxu0 0.0
    %833 = vmatpush2.msra.mxu0 0.0
    %834 = vmatprep.subr.mxu0 0.0
    %835 = vmatpush2.msra.mxu0 0.0
    %836 = vmatprep.subr.mxu0 0.0
    %837 = vmatpush2.msra.mxu0 0.0
    %838 = vmatprep.subr.mxu0 0.0
    %839 = vmatpush2.msra.mxu0 0.0
    %840 = vmatprep.subr.mxu0 0.0
    %841 = vmatpush2.msra.mxu0 0.0
    %842 = vmatprep.subr.mxu0 0.0
    %843 = vmatpush2.msra.mxu0 0.0
    %844 = vmatprep.subr.mxu0 0.0
    %845 = vmatpush2.msra.mxu0 0.0
    %846 = vmatprep.subr.mxu0 0.0
    %847 = vmatpush2.msra.mxu0 0.0
    %848 = vmatprep.subr.mxu0 0.0
    %849 = vmatpush2.msra.mxu0 0.0
    %850 = vmatprep.subr.mxu0 0.0
    %851 = vmatpush2.msra.mxu0 0.0
    %852 = vmatprep.subr.mxu0 0.0
    %853 = vmatpush2.msra.mxu0 0.0
    %854 = vmatprep.subr.mxu0 0.0
    %855 = vmatpush2.msra.mxu0 0.0
    %856 = vmatprep.mubr.f32.mxu0 0.0
    %857 = vmatmul.mubr.f32.gmra.mxu0 %v790
    %v858 = vpop.f32.mrf.mxu0
    %v859 = vadd.f32 %v68, %v858
    %v860 = vpop.f32.mrf.mxu0
    %861 = vdwg.mxu0
    %v862 = vxor.u32 %v859, 2147483648
    %v863 = vmul.f32 %v862, 1.442695
    %v864 = vpow.pop %v863
    %v865 = vadd.f32 %v864, 1.0
    %v866 = vrcp.pop %v865
    %v867 = vmul.f32 1.0, %v866
    %v868 = vtanh.pop %v859
    %v869 = vmul.f32 %v867, %v777
    %871 = vrot.lane.b32.xlu0 %v868, 64
    %v872 = vpop.permute.xlu0 %871
    %v874 = vmul.f32 %v867, %v872
    %876 = vrot.lane.b32.xlu0 %v874, 32
    %v877 = vpop.permute.xlu0 %876
    %v879 = vadd.f32 %v869, %v877
    %v880 = vtanh.pop %v879
    %882 = vrot.lane.b32.xlu0 %v880, 64
    %v883 = vpop.permute.xlu0 %882
    %v885 = vmul.f32 %v867, %v883
    %v886 = vld [vmem:[#allocation2] sm:$0xff]
    %v887 = vld [vmem:[#allocation2 + $0x8] sm:$0xff]
    %v888 = vld [vmem:[#allocation2 + $0x10] sm:$0xff]
    %v889 = vld [vmem:[#allocation2 + $0x18] sm:$0xff]
    %v890 = vld [vmem:[#allocation2 + $0x20] sm:$0xff]
    %v891 = vld [vmem:[#allocation2 + $0x28] sm:$0xff]
    %v892 = vld [vmem:[#allocation2 + $0x30] sm:$0xff]
    %v893 = vld [vmem:[#allocation2 + $0x38] sm:$0xff]
    %v894 = vld [vmem:[%s4] sm:$0x1]
    %895 = vrot.lane.b32.xlu0 %v171, 32
    %v896 = vpop.permute.xlu0 %895
    %vm898 = vcmask 261120
    %v899 = vsel %vm898, %v896, 0.0
    %v901 = vlaneseq
    %v902 = vshrl.u32 %v901, 7
    %v903 = vsub.s32 0, %v902
    %v904 = vrot.slane %v894, %v903
    %vm906 = vcmask 523264
    %v908 = vsel %vm906, %v899, 0
    %910 = vmatprep.subr.mxu0 0.0
    %911 = vmatpush1.msra.mxu0 0.0
    %912 = vmatprep.subr.mxu0 0.0
    %913 = vmatpush1.msra.mxu0 0.0
    %914 = vmatprep.subr.mxu0 0.0
    %915 = vmatpush1.msra.mxu0 0.0
    %916 = vmatprep.subr.mxu0 0.0
    %917 = vmatpush1.msra.mxu0 0.0
    %918 = vmatprep.subr.mxu0 0.0
    %919 = vmatpush1.msra.mxu0 0.0
    %920 = vmatprep.subr.mxu0 0.0
    %921 = vmatpush1.msra.mxu0 0.0
    %922 = vmatprep.subr.mxu0 0.0
    %923 = vmatpush1.msra.mxu0 0.0
    %924 = vmatprep.subr.mxu0 0.0
    %925 = vmatpush1.msra.mxu0 0.0
    %926 = vmatprep.subr.mxu0 0.0
    %927 = vmatpush1.msra.mxu0 %v893
    %928 = vmatprep.subr.mxu0 0.0
    %929 = vmatpush1.msra.mxu0 %v892
    %930 = vmatprep.subr.mxu0 0.0
    %931 = vmatpush1.msra.mxu0 %v891
    %932 = vmatprep.subr.mxu0 0.0
    %933 = vmatpush1.msra.mxu0 %v890
    %934 = vmatprep.subr.mxu0 0.0
    %935 = vmatpush1.msra.mxu0 %v889
    %936 = vmatprep.subr.mxu0 0.0
    %937 = vmatpush1.msra.mxu0 %v888
    %938 = vmatprep.subr.mxu0 0.0
    %939 = vmatpush1.msra.mxu0 %v887
    %940 = vmatprep.subr.mxu0 0.0
    %941 = vmatpush1.msra.mxu0 %v886
    %942 = vmatprep.subr.mxu0 0.0
    %943 = vmatpush2.msra.mxu0 0.0
    %944 = vmatprep.subr.mxu0 0.0
    %945 = vmatpush2.msra.mxu0 0.0
    %946 = vmatprep.subr.mxu0 0.0
    %947 = vmatpush2.msra.mxu0 0.0
    %948 = vmatprep.subr.mxu0 0.0
    %949 = vmatpush2.msra.mxu0 0.0
    %950 = vmatprep.subr.mxu0 0.0
    %951 = vmatpush2.msra.mxu0 0.0
    %952 = vmatprep.subr.mxu0 0.0
    %953 = vmatpush2.msra.mxu0 0.0
    %954 = vmatprep.subr.mxu0 0.0
    %955 = vmatpush2.msra.mxu0 0.0
    %956 = vmatprep.subr.mxu0 0.0
    %957 = vmatpush2.msra.mxu0 0.0
    %958 = vmatprep.subr.mxu0 0.0
    %959 = vmatpush2.msra.mxu0 0.0
    %960 = vmatprep.subr.mxu0 0.0
    %961 = vmatpush2.msra.mxu0 0.0
    %962 = vmatprep.subr.mxu0 0.0
    %963 = vmatpush2.msra.mxu0 0.0
    %964 = vmatprep.subr.mxu0 0.0
    %965 = vmatpush2.msra.mxu0 0.0
    %966 = vmatprep.subr.mxu0 0.0
    %967 = vmatpush2.msra.mxu0 0.0
    %968 = vmatprep.subr.mxu0 0.0
    %969 = vmatpush2.msra.mxu0 0.0
    %970 = vmatprep.subr.mxu0 0.0
    %971 = vmatpush2.msra.mxu0 0.0
    %972 = vmatprep.subr.mxu0 0.0
    %973 = vmatpush2.msra.mxu0 0.0
    %974 = vmatprep.mubr.f32.mxu0 0.0
    %975 = vmatmul.mubr.f32.gmra.mxu0 %v908
    %v976 = vpop.f32.mrf.mxu0
    %v977 = vadd.f32 %v904, %v976
    %v978 = vpop.f32.mrf.mxu0
    %979 = vdwg.mxu0
    %v980 = vxor.u32 %v977, 2147483648
    %v981 = vmul.f32 %v980, 1.442695
    %v982 = vpow.pop %v981
    %v983 = vadd.f32 %v982, 1.0
    %v984 = vrcp.pop %v983
    %v985 = vmul.f32 1.0, %v984
    %v986 = vtanh.pop %v977
    %v987 = vmul.f32 %v985, 0.0
    %989 = vrot.lane.b32.xlu0 %v986, 64
    %v990 = vpop.permute.xlu0 %989
    %v992 = vmul.f32 %v985, %v990
    %994 = vrot.lane.b32.xlu0 %v992, 32
    %v995 = vpop.permute.xlu0 %994
    %v997 = vadd.f32 %v987, %v995
    %v998 = vtanh.pop %v997
    %1000 = vrot.lane.b32.xlu0 %v998, 64
    %v1001 = vpop.permute.xlu0 %1000
    %v1003 = vmul.f32 %v985, %v1001
    %1004 = vrot.lane.b32.xlu0 %v273, 32
    %v1005 = vpop.permute.xlu0 %1004
    %1008 = vrot.lane.b32.xlu0 %v1003, 64
    %v1009 = vpop.permute.xlu0 %1008
    %v1011 = vsel %vm898, %v1005, %v1009
    %v1013 = vsel %vm906, %v1011, 0
    %1015 = vmatprep.subr.mxu0 0.0
    %1016 = vmatpush1.msra.mxu0 0.0
    %1017 = vmatprep.subr.mxu0 0.0
    %1018 = vmatpush1.msra.mxu0 0.0
    %1019 = vmatprep.subr.mxu0 0.0
    %1020 = vmatpush1.msra.mxu0 0.0
    %1021 = vmatprep.subr.mxu0 0.0
    %1022 = vmatpush1.msra.mxu0 0.0
    %1023 = vmatprep.subr.mxu0 0.0
    %1024 = vmatpush1.msra.mxu0 0.0
    %1025 = vmatprep.subr.mxu0 0.0
    %1026 = vmatpush1.msra.mxu0 0.0
    %1027 = vmatprep.subr.mxu0 0.0
    %1028 = vmatpush1.msra.mxu0 0.0
    %1029 = vmatprep.subr.mxu0 0.0
    %1030 = vmatpush1.msra.mxu0 0.0
    %1031 = vmatprep.subr.mxu0 0.0
    %1032 = vmatpush1.msra.mxu0 %v893
    %1033 = vmatprep.subr.mxu0 0.0
    %1034 = vmatpush1.msra.mxu0 %v892
    %1035 = vmatprep.subr.mxu0 0.0
    %1036 = vmatpush1.msra.mxu0 %v891
    %1037 = vmatprep.subr.mxu0 0.0
    %1038 = vmatpush1.msra.mxu0 %v890
    %1039 = vmatprep.subr.mxu0 0.0
    %1040 = vmatpush1.msra.mxu0 %v889
    %1041 = vmatprep.subr.mxu0 0.0
    %1042 = vmatpush1.msra.mxu0 %v888
    %1043 = vmatprep.subr.mxu0 0.0
    %1044 = vmatpush1.msra.mxu0 %v887
    %1045 = vmatprep.subr.mxu0 0.0
    %1046 = vmatpush1.msra.mxu0 %v886
    %1047 = vmatprep.subr.mxu0 0.0
    %1048 = vmatpush2.msra.mxu0 0.0
    %1049 = vmatprep.subr.mxu0 0.0
    %1050 = vmatpush2.msra.mxu0 0.0
    %1051 = vmatprep.subr.mxu0 0.0
    %1052 = vmatpush2.msra.mxu0 0.0
    %1053 = vmatprep.subr.mxu0 0.0
    %1054 = vmatpush2.msra.mxu0 0.0
    %1055 = vmatprep.subr.mxu0 0.0
    %1056 = vmatpush2.msra.mxu0 0.0
    %1057 = vmatprep.subr.mxu0 0.0
    %1058 = vmatpush2.msra.mxu0 0.0
    %1059 = vmatprep.subr.mxu0 0.0
    %1060 = vmatpush2.msra.mxu0 0.0
    %1061 = vmatprep.subr.mxu0 0.0
    %1062 = vmatpush2.msra.mxu0 0.0
    %1063 = vmatprep.subr.mxu0 0.0
    %1064 = vmatpush2.msra.mxu0 0.0
    %1065 = vmatprep.subr.mxu0 0.0
    %1066 = vmatpush2.msra.mxu0 0.0
    %1067 = vmatprep.subr.mxu0 0.0
    %1068 = vmatpush2.msra.mxu0 0.0
    %1069 = vmatprep.subr.mxu0 0.0
    %1070 = vmatpush2.msra.mxu0 0.0
    %1071 = vmatprep.subr.mxu0 0.0
    %1072 = vmatpush2.msra.mxu0 0.0
    %1073 = vmatprep.subr.mxu0 0.0
    %1074 = vmatpush2.msra.mxu0 0.0
    %1075 = vmatprep.subr.mxu0 0.0
    %1076 = vmatpush2.msra.mxu0 0.0
    %1077 = vmatprep.subr.mxu0 0.0
    %1078 = vmatpush2.msra.mxu0 0.0
    %1079 = vmatprep.mubr.f32.mxu0 0.0
    %1080 = vmatmul.mubr.f32.gmra.mxu0 %v1013
    %v1081 = vpop.f32.mrf.mxu0
    %v1082 = vadd.f32 %v904, %v1081
    %v1083 = vpop.f32.mrf.mxu0
    %1084 = vdwg.mxu0
    %v1085 = vxor.u32 %v1082, 2147483648
    %v1086 = vmul.f32 %v1085, 1.442695
    %v1087 = vpow.pop %v1086
    %v1088 = vadd.f32 %v1087, 1.0
    %v1089 = vrcp.pop %v1088
    %v1090 = vmul.f32 1.0, %v1089
    %v1091 = vtanh.pop %v1082
    %v1092 = vmul.f32 %v1090, %v997
    %1094 = vrot.lane.b32.xlu0 %v1091, 64
    %v1095 = vpop.permute.xlu0 %1094
    %v1097 = vmul.f32 %v1090, %v1095
    %1099 = vrot.lane.b32.xlu0 %v1097, 32
    %v1100 = vpop.permute.xlu0 %1099
    %v1102 = vadd.f32 %v1092, %v1100
    %v1103 = vtanh.pop %v1102
    %1105 = vrot.lane.b32.xlu0 %v1103, 64
    %v1106 = vpop.permute.xlu0 %1105
    %v1108 = vmul.f32 %v1090, %v1106
    %1109 = vrot.lane.b32.xlu0 %v375, 32
    %v1110 = vpop.permute.xlu0 %1109
    %1113 = vrot.lane.b32.xlu0 %v1108, 64
    %v1114 = vpop.permute.xlu0 %1113
    %v1116 = vsel %vm898, %v1110, %v1114
    %v1118 = vsel %vm906, %v1116, 0
    %1120 = vmatprep.subr.mxu0 0.0
    %1121 = vmatpush1.msra.mxu0 0.0
    %1122 = vmatprep.subr.mxu0 0.0
    %1123 = vmatpush1.msra.mxu0 0.0
    %1124 = vmatprep.subr.mxu0 0.0
    %1125 = vmatpush1.msra.mxu0 0.0
    %1126 = vmatprep.subr.mxu0 0.0
    %1127 = vmatpush1.msra.mxu0 0.0
    %1128 = vmatprep.subr.mxu0 0.0
    %1129 = vmatpush1.msra.mxu0 0.0
    %1130 = vmatprep.subr.mxu0 0.0
    %1131 = vmatpush1.msra.mxu0 0.0
    %1132 = vmatprep.subr.mxu0 0.0
    %1133 = vmatpush1.msra.mxu0 0.0
    %1134 = vmatprep.subr.mxu0 0.0
    %1135 = vmatpush1.msra.mxu0 0.0
    %1136 = vmatprep.subr.mxu0 0.0
    %1137 = vmatpush1.msra.mxu0 %v893
    %1138 = vmatprep.subr.mxu0 0.0
    %1139 = vmatpush1.msra.mxu0 %v892
    %1140 = vmatprep.subr.mxu0 0.0
    %1141 = vmatpush1.msra.mxu0 %v891
    %1142 = vmatprep.subr.mxu0 0.0
    %1143 = vmatpush1.msra.mxu0 %v890
    %1144 = vmatprep.subr.mxu0 0.0
    %1145 = vmatpush1.msra.mxu0 %v889
    %1146 = vmatprep.subr.mxu0 0.0
    %1147 = vmatpush1.msra.mxu0 %v888
    %1148 = vmatprep.subr.mxu0 0.0
    %1149 = vmatpush1.msra.mxu0 %v887
    %1150 = vmatprep.subr.mxu0 0.0
    %1151 = vmatpush1.msra.mxu0 %v886
    %1152 = vmatprep.subr.mxu0 0.0
    %1153 = vmatpush2.msra.mxu0 0.0
    %1154 = vmatprep.subr.mxu0 0.0
    %1155 = vmatpush2.msra.mxu0 0.0
    %1156 = vmatprep.subr.mxu0 0.0
    %1157 = vmatpush2.msra.mxu0 0.0
    %1158 = vmatprep.subr.mxu0 0.0
    %1159 = vmatpush2.msra.mxu0 0.0
    %1160 = vmatprep.subr.mxu0 0.0
    %1161 = vmatpush2.msra.mxu0 0.0
    %1162 = vmatprep.subr.mxu0 0.0
    %1163 = vmatpush2.msra.mxu0 0.0
    %1164 = vmatprep.subr.mxu0 0.0
    %1165 = vmatpush2.msra.mxu0 0.0
    %1166 = vmatprep.subr.mxu0 0.0
    %1167 = vmatpush2.msra.mxu0 0.0
    %1168 = vmatprep.subr.mxu0 0.0
    %1169 = vmatpush2.msra.mxu0 0.0
    %1170 = vmatprep.subr.mxu0 0.0
    %1171 = vmatpush2.msra.mxu0 0.0
    %1172 = vmatprep.subr.mxu0 0.0
    %1173 = vmatpush2.msra.mxu0 0.0
    %1174 = vmatprep.subr.mxu0 0.0
    %1175 = vmatpush2.msra.mxu0 0.0
    %1176 = vmatprep.subr.mxu0 0.0
    %1177 = vmatpush2.msra.mxu0 0.0
    %1178 = vmatprep.subr.mxu0 0.0
    %1179 = vmatpush2.msra.mxu0 0.0
    %1180 = vmatprep.subr.mxu0 0.0
    %1181 = vmatpush2.msra.mxu0 0.0
    %1182 = vmatprep.subr.mxu0 0.0
    %1183 = vmatpush2.msra.mxu0 0.0
    %1184 = vmatprep.mubr.f32.mxu0 0.0
    %1185 = vmatmul.mubr.f32.gmra.mxu0 %v1118
    %v1186 = vpop.f32.mrf.mxu0
    %v1187 = vadd.f32 %v904, %v1186
    %v1188 = vpop.f32.mrf.mxu0
    %1189 = vdwg.mxu0
    %v1190 = vxor.u32 %v1187, 2147483648
    %v1191 = vmul.f32 %v1190, 1.442695
    %v1192 = vpow.pop %v1191
    %v1193 = vadd.f32 %v1192, 1.0
    %v1194 = vrcp.pop %v1193
    %v1195 = vmul.f32 1.0, %v1194
    %v1196 = vtanh.pop %v1187
    %v1197 = vmul.f32 %v1195, %v1102
    %1199 = vrot.lane.b32.xlu0 %v1196, 64
    %v1200 = vpop.permute.xlu0 %1199
    %v1202 = vmul.f32 %v1195, %v1200
    %1204 = vrot.lane.b32.xlu0 %v1202, 32
    %v1205 = vpop.permute.xlu0 %1204
    %v1207 = vadd.f32 %v1197, %v1205
    %v1208 = vtanh.pop %v1207
    %1210 = vrot.lane.b32.xlu0 %v1208, 64
    %v1211 = vpop.permute.xlu0 %1210
    %v1213 = vmul.f32 %v1195, %v1211
    %1214 = vrot.lane.b32.xlu0 %v477, 32
    %v1215 = vpop.permute.xlu0 %1214
    %1218 = vrot.lane.b32.xlu0 %v1213, 64
    %v1219 = vpop.permute.xlu0 %1218
    %v1221 = vsel %vm898, %v1215, %v1219
    %v1223 = vsel %vm906, %v1221, 0
    %1225 = vmatprep.subr.mxu0 0.0
    %1226 = vmatpush1.msra.mxu0 0.0
    %1227 = vmatprep.subr.mxu0 0.0
    %1228 = vmatpush1.msra.mxu0 0.0
    %1229 = vmatprep.subr.mxu0 0.0
    %1230 = vmatpush1.msra.mxu0 0.0
    %1231 = vmatprep.subr.mxu0 0.0
    %1232 = vmatpush1.msra.mxu0 0.0
    %1233 = vmatprep.subr.mxu0 0.0
    %1234 = vmatpush1.msra.mxu0 0.0
    %1235 = vmatprep.subr.mxu0 0.0
    %1236 = vmatpush1.msra.mxu0 0.0
    %1237 = vmatprep.subr.mxu0 0.0
    %1238 = vmatpush1.msra.mxu0 0.0
    %1239 = vmatprep.subr.mxu0 0.0
    %1240 = vmatpush1.msra.mxu0 0.0
    %1241 = vmatprep.subr.mxu0 0.0
    %1242 = vmatpush1.msra.mxu0 %v893
    %1243 = vmatprep.subr.mxu0 0.0
    %1244 = vmatpush1.msra.mxu0 %v892
    %1245 = vmatprep.subr.mxu0 0.0
    %1246 = vmatpush1.msra.mxu0 %v891
    %1247 = vmatprep.subr.mxu0 0.0
    %1248 = vmatpush1.msra.mxu0 %v890
    %1249 = vmatprep.subr.mxu0 0.0
    %1250 = vmatpush1.msra.mxu0 %v889
    %1251 = vmatprep.subr.mxu0 0.0
    %1252 = vmatpush1.msra.mxu0 %v888
    %1253 = vmatprep.subr.mxu0 0.0
    %1254 = vmatpush1.msra.mxu0 %v887
    %1255 = vmatprep.subr.mxu0 0.0
    %1256 = vmatpush1.msra.mxu0 %v886
    %1257 = vmatprep.subr.mxu0 0.0
    %1258 = vmatpush2.msra.mxu0 0.0
    %1259 = vmatprep.subr.mxu0 0.0
    %1260 = vmatpush2.msra.mxu0 0.0
    %1261 = vmatprep.subr.mxu0 0.0
    %1262 = vmatpush2.msra.mxu0 0.0
    %1263 = vmatprep.subr.mxu0 0.0
    %1264 = vmatpush2.msra.mxu0 0.0
    %1265 = vmatprep.subr.mxu0 0.0
    %1266 = vmatpush2.msra.mxu0 0.0
    %1267 = vmatprep.subr.mxu0 0.0
    %1268 = vmatpush2.msra.mxu0 0.0
    %1269 = vmatprep.subr.mxu0 0.0
    %1270 = vmatpush2.msra.mxu0 0.0
    %1271 = vmatprep.subr.mxu0 0.0
    %1272 = vmatpush2.msra.mxu0 0.0
    %1273 = vmatprep.subr.mxu0 0.0
    %1274 = vmatpush2.msra.mxu0 0.0
    %1275 = vmatprep.subr.mxu0 0.0
    %1276 = vmatpush2.msra.mxu0 0.0
    %1277 = vmatprep.subr.mxu0 0.0
    %1278 = vmatpush2.msra.mxu0 0.0
    %1279 = vmatprep.subr.mxu0 0.0
    %1280 = vmatpush2.msra.mxu0 0.0
    %1281 = vmatprep.subr.mxu0 0.0
    %1282 = vmatpush2.msra.mxu0 0.0
    %1283 = vmatprep.subr.mxu0 0.0
    %1284 = vmatpush2.msra.mxu0 0.0
    %1285 = vmatprep.subr.mxu0 0.0
    %1286 = vmatpush2.msra.mxu0 0.0
    %1287 = vmatprep.subr.mxu0 0.0
    %1288 = vmatpush2.msra.mxu0 0.0
    %1289 = vmatprep.mubr.f32.mxu0 0.0
    %1290 = vmatmul.mubr.f32.gmra.mxu0 %v1223
    %v1291 = vpop.f32.mrf.mxu0
    %v1292 = vadd.f32 %v904, %v1291
    %v1293 = vpop.f32.mrf.mxu0
    %1294 = vdwg.mxu0
    %v1295 = vxor.u32 %v1292, 2147483648
    %v1296 = vmul.f32 %v1295, 1.442695
    %v1297 = vpow.pop %v1296
    %v1298 = vadd.f32 %v1297, 1.0
    %v1299 = vrcp.pop %v1298
    %v1300 = vmul.f32 1.0, %v1299
    %v1301 = vtanh.pop %v1292
    %v1302 = vmul.f32 %v1300, %v1207
    %1304 = vrot.lane.b32.xlu0 %v1301, 64
    %v1305 = vpop.permute.xlu0 %1304
    %v1307 = vmul.f32 %v1300, %v1305
    %1309 = vrot.lane.b32.xlu0 %v1307, 32
    %v1310 = vpop.permute.xlu0 %1309
    %v1312 = vadd.f32 %v1302, %v1310
    %v1313 = vtanh.pop %v1312
    %1315 = vrot.lane.b32.xlu0 %v1313, 64
    %v1316 = vpop.permute.xlu0 %1315
    %v1318 = vmul.f32 %v1300, %v1316
    %1319 = vrot.lane.b32.xlu0 %v579, 32
    %v1320 = vpop.permute.xlu0 %1319
    %1323 = vrot.lane.b32.xlu0 %v1318, 64
    %v1324 = vpop.permute.xlu0 %1323
    %v1326 = vsel %vm898, %v1320, %v1324
    %v1328 = vsel %vm906, %v1326, 0
    %1330 = vmatprep.subr.mxu0 0.0
    %1331 = vmatpush1.msra.mxu0 0.0
    %1332 = vmatprep.subr.mxu0 0.0
    %1333 = vmatpush1.msra.mxu0 0.0
    %1334 = vmatprep.subr.mxu0 0.0
    %1335 = vmatpush1.msra.mxu0 0.0
    %1336 = vmatprep.subr.mxu0 0.0
    %1337 = vmatpush1.msra.mxu0 0.0
    %1338 = vmatprep.subr.mxu0 0.0
    %1339 = vmatpush1.msra.mxu0 0.0
    %1340 = vmatprep.subr.mxu0 0.0
    %1341 = vmatpush1.msra.mxu0 0.0
    %1342 = vmatprep.subr.mxu0 0.0
    %1343 = vmatpush1.msra.mxu0 0.0
    %1344 = vmatprep.subr.mxu0 0.0
    %1345 = vmatpush1.msra.mxu0 0.0
    %1346 = vmatprep.subr.mxu0 0.0
    %1347 = vmatpush1.msra.mxu0 %v893
    %1348 = vmatprep.subr.mxu0 0.0
    %1349 = vmatpush1.msra.mxu0 %v892
    %1350 = vmatprep.subr.mxu0 0.0
    %1351 = vmatpush1.msra.mxu0 %v891
    %1352 = vmatprep.subr.mxu0 0.0
    %1353 = vmatpush1.msra.mxu0 %v890
    %1354 = vmatprep.subr.mxu0 0.0
    %1355 = vmatpush1.msra.mxu0 %v889
    %1356 = vmatprep.subr.mxu0 0.0
    %1357 = vmatpush1.msra.mxu0 %v888
    %1358 = vmatprep.subr.mxu0 0.0
    %1359 = vmatpush1.msra.mxu0 %v887
    %1360 = vmatprep.subr.mxu0 0.0
    %1361 = vmatpush1.msra.mxu0 %v886
    %1362 = vmatprep.subr.mxu0 0.0
    %1363 = vmatpush2.msra.mxu0 0.0
    %1364 = vmatprep.subr.mxu0 0.0
    %1365 = vmatpush2.msra.mxu0 0.0
    %1366 = vmatprep.subr.mxu0 0.0
    %1367 = vmatpush2.msra.mxu0 0.0
    %1368 = vmatprep.subr.mxu0 0.0
    %1369 = vmatpush2.msra.mxu0 0.0
    %1370 = vmatprep.subr.mxu0 0.0
    %1371 = vmatpush2.msra.mxu0 0.0
    %1372 = vmatprep.subr.mxu0 0.0
    %1373 = vmatpush2.msra.mxu0 0.0
    %1374 = vmatprep.subr.mxu0 0.0
    %1375 = vmatpush2.msra.mxu0 0.0
    %1376 = vmatprep.subr.mxu0 0.0
    %1377 = vmatpush2.msra.mxu0 0.0
    %1378 = vmatprep.subr.mxu0 0.0
    %1379 = vmatpush2.msra.mxu0 0.0
    %1380 = vmatprep.subr.mxu0 0.0
    %1381 = vmatpush2.msra.mxu0 0.0
    %1382 = vmatprep.subr.mxu0 0.0
    %1383 = vmatpush2.msra.mxu0 0.0
    %1384 = vmatprep.subr.mxu0 0.0
    %1385 = vmatpush2.msra.mxu0 0.0
    %1386 = vmatprep.subr.mxu0 0.0
    %1387 = vmatpush2.msra.mxu0 0.0
    %1388 = vmatprep.subr.mxu0 0.0
    %1389 = vmatpush2.msra.mxu0 0.0
    %1390 = vmatprep.subr.mxu0 0.0
    %1391 = vmatpush2.msra.mxu0 0.0
    %1392 = vmatprep.subr.mxu0 0.0
    %1393 = vmatpush2.msra.mxu0 0.0
    %1394 = vmatprep.mubr.f32.mxu0 0.0
    %1395 = vmatmul.mubr.f32.gmra.mxu0 %v1328
    %v1396 = vpop.f32.mrf.mxu0
    %v1397 = vadd.f32 %v904, %v1396
    %v1398 = vpop.f32.mrf.mxu0
    %1399 = vdwg.mxu0
    %v1400 = vxor.u32 %v1397, 2147483648
    %v1401 = vmul.f32 %v1400, 1.442695
    %v1402 = vpow.pop %v1401
    %v1403 = vadd.f32 %v1402, 1.0
    %v1404 = vrcp.pop %v1403
    %v1405 = vmul.f32 1.0, %v1404
    %v1406 = vtanh.pop %v1397
    %v1407 = vmul.f32 %v1405, %v1312
    %1409 = vrot.lane.b32.xlu0 %v1406, 64
    %v1410 = vpop.permute.xlu0 %1409
    %v1412 = vmul.f32 %v1405, %v1410
    %1414 = vrot.lane.b32.xlu0 %v1412, 32
    %v1415 = vpop.permute.xlu0 %1414
    %v1417 = vadd.f32 %v1407, %v1415
    %v1418 = vtanh.pop %v1417
    %1420 = vrot.lane.b32.xlu0 %v1418, 64
    %v1421 = vpop.permute.xlu0 %1420
    %v1423 = vmul.f32 %v1405, %v1421
    %1424 = vrot.lane.b32.xlu0 %v681, 32
    %v1425 = vpop.permute.xlu0 %1424
    %1428 = vrot.lane.b32.xlu0 %v1423, 64
    %v1429 = vpop.permute.xlu0 %1428
    %v1431 = vsel %vm898, %v1425, %v1429
    %v1433 = vsel %vm906, %v1431, 0
    %1435 = vmatprep.subr.mxu0 0.0
    %1436 = vmatpush1.msra.mxu0 0.0
    %1437 = vmatprep.subr.mxu0 0.0
    %1438 = vmatpush1.msra.mxu0 0.0
    %1439 = vmatprep.subr.mxu0 0.0
    %1440 = vmatpush1.msra.mxu0 0.0
    %1441 = vmatprep.subr.mxu0 0.0
    %1442 = vmatpush1.msra.mxu0 0.0
    %1443 = vmatprep.subr.mxu0 0.0
    %1444 = vmatpush1.msra.mxu0 0.0
    %1445 = vmatprep.subr.mxu0 0.0
    %1446 = vmatpush1.msra.mxu0 0.0
    %1447 = vmatprep.subr.mxu0 0.0
    %1448 = vmatpush1.msra.mxu0 0.0
    %1449 = vmatprep.subr.mxu0 0.0
    %1450 = vmatpush1.msra.mxu0 0.0
    %1451 = vmatprep.subr.mxu0 0.0
    %1452 = vmatpush1.msra.mxu0 %v893
    %1453 = vmatprep.subr.mxu0 0.0
    %1454 = vmatpush1.msra.mxu0 %v892
    %1455 = vmatprep.subr.mxu0 0.0
    %1456 = vmatpush1.msra.mxu0 %v891
    %1457 = vmatprep.subr.mxu0 0.0
    %1458 = vmatpush1.msra.mxu0 %v890
    %1459 = vmatprep.subr.mxu0 0.0
    %1460 = vmatpush1.msra.mxu0 %v889
    %1461 = vmatprep.subr.mxu0 0.0
    %1462 = vmatpush1.msra.mxu0 %v888
    %1463 = vmatprep.subr.mxu0 0.0
    %1464 = vmatpush1.msra.mxu0 %v887
    %1465 = vmatprep.subr.mxu0 0.0
    %1466 = vmatpush1.msra.mxu0 %v886
    %1467 = vmatprep.subr.mxu0 0.0
    %1468 = vmatpush2.msra.mxu0 0.0
    %1469 = vmatprep.subr.mxu0 0.0
    %1470 = vmatpush2.msra.mxu0 0.0
    %1471 = vmatprep.subr.mxu0 0.0
    %1472 = vmatpush2.msra.mxu0 0.0
    %1473 = vmatprep.subr.mxu0 0.0
    %1474 = vmatpush2.msra.mxu0 0.0
    %1475 = vmatprep.subr.mxu0 0.0
    %1476 = vmatpush2.msra.mxu0 0.0
    %1477 = vmatprep.subr.mxu0 0.0
    %1478 = vmatpush2.msra.mxu0 0.0
    %1479 = vmatprep.subr.mxu0 0.0
    %1480 = vmatpush2.msra.mxu0 0.0
    %1481 = vmatprep.subr.mxu0 0.0
    %1482 = vmatpush2.msra.mxu0 0.0
    %1483 = vmatprep.subr.mxu0 0.0
    %1484 = vmatpush2.msra.mxu0 0.0
    %1485 = vmatprep.subr.mxu0 0.0
    %1486 = vmatpush2.msra.mxu0 0.0
    %1487 = vmatprep.subr.mxu0 0.0
    %1488 = vmatpush2.msra.mxu0 0.0
    %1489 = vmatprep.subr.mxu0 0.0
    %1490 = vmatpush2.msra.mxu0 0.0
    %1491 = vmatprep.subr.mxu0 0.0
    %1492 = vmatpush2.msra.mxu0 0.0
    %1493 = vmatprep.subr.mxu0 0.0
    %1494 = vmatpush2.msra.mxu0 0.0
    %1495 = vmatprep.subr.mxu0 0.0
    %1496 = vmatpush2.msra.mxu0 0.0
    %1497 = vmatprep.subr.mxu0 0.0
    %1498 = vmatpush2.msra.mxu0 0.0
    %1499 = vmatprep.mubr.f32.mxu0 0.0
    %1500 = vmatmul.mubr.f32.gmra.mxu0 %v1433
    %v1501 = vpop.f32.mrf.mxu0
    %v1502 = vadd.f32 %v904, %v1501
    %v1503 = vpop.f32.mrf.mxu0
    %1504 = vdwg.mxu0
    %v1505 = vxor.u32 %v1502, 2147483648
    %v1506 = vmul.f32 %v1505, 1.442695
    %v1507 = vpow.pop %v1506
    %v1508 = vadd.f32 %v1507, 1.0
    %v1509 = vrcp.pop %v1508
    %v1510 = vmul.f32 1.0, %v1509
    %v1511 = vtanh.pop %v1502
    %v1512 = vmul.f32 %v1510, %v1417
    %1514 = vrot.lane.b32.xlu0 %v1511, 64
    %v1515 = vpop.permute.xlu0 %1514
    %v1517 = vmul.f32 %v1510, %v1515
    %1519 = vrot.lane.b32.xlu0 %v1517, 32
    %v1520 = vpop.permute.xlu0 %1519
    %v1522 = vadd.f32 %v1512, %v1520
    %v1523 = vtanh.pop %v1522
    %1525 = vrot.lane.b32.xlu0 %v1523, 64
    %v1526 = vpop.permute.xlu0 %1525
    %v1528 = vmul.f32 %v1510, %v1526
    %1529 = vrot.lane.b32.xlu0 %v783, 32
    %v1530 = vpop.permute.xlu0 %1529
    %1533 = vrot.lane.b32.xlu0 %v1528, 64
    %v1534 = vpop.permute.xlu0 %1533
    %v1536 = vsel %vm898, %v1530, %v1534
    %v1538 = vsel %vm906, %v1536, 0
    %1540 = vmatprep.subr.mxu0 0.0
    %1541 = vmatpush1.msra.mxu0 0.0
    %1542 = vmatprep.subr.mxu0 0.0
    %1543 = vmatpush1.msra.mxu0 0.0
    %1544 = vmatprep.subr.mxu0 0.0
    %1545 = vmatpush1.msra.mxu0 0.0
    %1546 = vmatprep.subr.mxu0 0.0
    %1547 = vmatpush1.msra.mxu0 0.0
    %1548 = vmatprep.subr.mxu0 0.0
    %1549 = vmatpush1.msra.mxu0 0.0
    %1550 = vmatprep.subr.mxu0 0.0
    %1551 = vmatpush1.msra.mxu0 0.0
    %1552 = vmatprep.subr.mxu0 0.0
    %1553 = vmatpush1.msra.mxu0 0.0
    %1554 = vmatprep.subr.mxu0 0.0
    %1555 = vmatpush1.msra.mxu0 0.0
    %1556 = vmatprep.subr.mxu0 0.0
    %1557 = vmatpush1.msra.mxu0 %v893
    %1558 = vmatprep.subr.mxu0 0.0
    %1559 = vmatpush1.msra.mxu0 %v892
    %1560 = vmatprep.subr.mxu0 0.0
    %1561 = vmatpush1.msra.mxu0 %v891
    %1562 = vmatprep.subr.mxu0 0.0
    %1563 = vmatpush1.msra.mxu0 %v890
    %1564 = vmatprep.subr.mxu0 0.0
    %1565 = vmatpush1.msra.mxu0 %v889
    %1566 = vmatprep.subr.mxu0 0.0
    %1567 = vmatpush1.msra.mxu0 %v888
    %1568 = vmatprep.subr.mxu0 0.0
    %1569 = vmatpush1.msra.mxu0 %v887
    %1570 = vmatprep.subr.mxu0 0.0
    %1571 = vmatpush1.msra.mxu0 %v886
    %1572 = vmatprep.subr.mxu0 0.0
    %1573 = vmatpush2.msra.mxu0 0.0
    %1574 = vmatprep.subr.mxu0 0.0
    %1575 = vmatpush2.msra.mxu0 0.0
    %1576 = vmatprep.subr.mxu0 0.0
    %1577 = vmatpush2.msra.mxu0 0.0
    %1578 = vmatprep.subr.mxu0 0.0
    %1579 = vmatpush2.msra.mxu0 0.0
    %1580 = vmatprep.subr.mxu0 0.0
    %1581 = vmatpush2.msra.mxu0 0.0
    %1582 = vmatprep.subr.mxu0 0.0
    %1583 = vmatpush2.msra.mxu0 0.0
    %1584 = vmatprep.subr.mxu0 0.0
    %1585 = vmatpush2.msra.mxu0 0.0
    %1586 = vmatprep.subr.mxu0 0.0
    %1587 = vmatpush2.msra.mxu0 0.0
    %1588 = vmatprep.subr.mxu0 0.0
    %1589 = vmatpush2.msra.mxu0 0.0
    %1590 = vmatprep.subr.mxu0 0.0
    %1591 = vmatpush2.msra.mxu0 0.0
    %1592 = vmatprep.subr.mxu0 0.0
    %1593 = vmatpush2.msra.mxu0 0.0
    %1594 = vmatprep.subr.mxu0 0.0
    %1595 = vmatpush2.msra.mxu0 0.0
    %1596 = vmatprep.subr.mxu0 0.0
    %1597 = vmatpush2.msra.mxu0 0.0
    %1598 = vmatprep.subr.mxu0 0.0
    %1599 = vmatpush2.msra.mxu0 0.0
    %1600 = vmatprep.subr.mxu0 0.0
    %1601 = vmatpush2.msra.mxu0 0.0
    %1602 = vmatprep.subr.mxu0 0.0
    %1603 = vmatpush2.msra.mxu0 0.0
    %1604 = vmatprep.mubr.f32.mxu0 0.0
    %1605 = vmatmul.mubr.f32.gmra.mxu0 %v1538
    %v1606 = vpop.f32.mrf.mxu0
    %v1607 = vadd.f32 %v904, %v1606
    %v1608 = vpop.f32.mrf.mxu0
    %1609 = vdwg.mxu0
    %v1610 = vxor.u32 %v1607, 2147483648
    %v1611 = vmul.f32 %v1610, 1.442695
    %v1612 = vpow.pop %v1611
    %v1613 = vadd.f32 %v1612, 1.0
    %v1614 = vrcp.pop %v1613
    %v1615 = vmul.f32 1.0, %v1614
    %v1616 = vtanh.pop %v1607
    %v1617 = vmul.f32 %v1615, %v1522
    %1619 = vrot.lane.b32.xlu0 %v1616, 64
    %v1620 = vpop.permute.xlu0 %1619
    %v1622 = vmul.f32 %v1615, %v1620
    %1624 = vrot.lane.b32.xlu0 %v1622, 32
    %v1625 = vpop.permute.xlu0 %1624
    %v1627 = vadd.f32 %v1617, %v1625
    %v1628 = vtanh.pop %v1627
    %1630 = vrot.lane.b32.xlu0 %v1628, 64
    %v1631 = vpop.permute.xlu0 %1630
    %v1633 = vmul.f32 %v1615, %v1631
    %1635 = vrot.lane.b32.xlu0 %v885, 32
    %v1636 = vpop.permute.xlu0 %1635
    %1639 = vrot.lane.b32.xlu0 %v1633, 64
    %v1640 = vpop.permute.xlu0 %1639
    %v1642 = vsel %vm898, %v1636, %v1640
    %v1644 = vsel %vm906, %v1642, 0
    %1646 = vmatprep.subr.mxu0 0.0
    %1647 = vmatpush1.msra.mxu0 0.0
    %1648 = vmatprep.subr.mxu0 0.0
    %1649 = vmatpush1.msra.mxu0 0.0
    %1650 = vmatprep.subr.mxu0 0.0
    %1651 = vmatpush1.msra.mxu0 0.0
    %1652 = vmatprep.subr.mxu0 0.0
    %1653 = vmatpush1.msra.mxu0 0.0
    %1654 = vmatprep.subr.mxu0 0.0
    %1655 = vmatpush1.msra.mxu0 0.0
    %1656 = vmatprep.subr.mxu0 0.0
    %1657 = vmatpush1.msra.mxu0 0.0
    %1658 = vmatprep.subr.mxu0 0.0
    %1659 = vmatpush1.msra.mxu0 0.0
    %1660 = vmatprep.subr.mxu0 0.0
    %1661 = vmatpush1.msra.mxu0 0.0
    %1662 = vmatprep.subr.mxu0 0.0
    %1663 = vmatpush1.msra.mxu0 %v893
    %1664 = vmatprep.subr.mxu0 0.0
    %1665 = vmatpush1.msra.mxu0 %v892
    %1666 = vmatprep.subr.mxu0 0.0
    %1667 = vmatpush1.msra.mxu0 %v891
    %1668 = vmatprep.subr.mxu0 0.0
    %1669 = vmatpush1.msra.mxu0 %v890
    %1670 = vmatprep.subr.mxu0 0.0
    %1671 = vmatpush1.msra.mxu0 %v889
    %1672 = vmatprep.subr.mxu0 0.0
    %1673 = vmatpush1.msra.mxu0 %v888
    %1674 = vmatprep.subr.mxu0 0.0
    %1675 = vmatpush1.msra.mxu0 %v887
    %1676 = vmatprep.subr.mxu0 0.0
    %1677 = vmatpush1.msra.mxu0 %v886
    %1678 = vmatprep.subr.mxu0 0.0
    %1679 = vmatpush2.msra.mxu0 0.0
    %1680 = vmatprep.subr.mxu0 0.0
    %1681 = vmatpush2.msra.mxu0 0.0
    %1682 = vmatprep.subr.mxu0 0.0
    %1683 = vmatpush2.msra.mxu0 0.0
    %1684 = vmatprep.subr.mxu0 0.0
    %1685 = vmatpush2.msra.mxu0 0.0
    %1686 = vmatprep.subr.mxu0 0.0
    %1687 = vmatpush2.msra.mxu0 0.0
    %1688 = vmatprep.subr.mxu0 0.0
    %1689 = vmatpush2.msra.mxu0 0.0
    %1690 = vmatprep.subr.mxu0 0.0
    %1691 = vmatpush2.msra.mxu0 0.0
    %1692 = vmatprep.subr.mxu0 0.0
    %1693 = vmatpush2.msra.mxu0 0.0
    %1694 = vmatprep.subr.mxu0 0.0
    %1695 = vmatpush2.msra.mxu0 0.0
    %1696 = vmatprep.subr.mxu0 0.0
    %1697 = vmatpush2.msra.mxu0 0.0
    %1698 = vmatprep.subr.mxu0 0.0
    %1699 = vmatpush2.msra.mxu0 0.0
    %1700 = vmatprep.subr.mxu0 0.0
    %1701 = vmatpush2.msra.mxu0 0.0
    %1702 = vmatprep.subr.mxu0 0.0
    %1703 = vmatpush2.msra.mxu0 0.0
    %1704 = vmatprep.subr.mxu0 0.0
    %1705 = vmatpush2.msra.mxu0 0.0
    %1706 = vmatprep.subr.mxu0 0.0
    %1707 = vmatpush2.msra.mxu0 0.0
    %1708 = vmatprep.subr.mxu0 0.0
    %1709 = vmatpush2.msra.mxu0 0.0
    %1710 = vmatprep.mubr.f32.mxu0 0.0
    %1711 = vmatmul.mubr.f32.gmra.mxu0 %v1644
    %v1712 = vpop.f32.mrf.mxu0
    %v1713 = vadd.f32 %v904, %v1712
    %v1714 = vpop.f32.mrf.mxu0
    %1715 = vdwg.mxu0
    %v1716 = vxor.u32 %v1713, 2147483648
    %v1717 = vmul.f32 %v1716, 1.442695
    %v1718 = vpow.pop %v1717
    %v1719 = vadd.f32 %v1718, 1.0
    %v1720 = vrcp.pop %v1719
    %v1721 = vmul.f32 1.0, %v1720
    %v1722 = vtanh.pop %v1713
    %v1723 = vmul.f32 %v1721, %v1627
    %1725 = vrot.lane.b32.xlu0 %v1722, 64
    %v1726 = vpop.permute.xlu0 %1725
    %v1728 = vmul.f32 %v1721, %v1726
    %1730 = vrot.lane.b32.xlu0 %v1728, 32
    %v1731 = vpop.permute.xlu0 %1730
    %v1733 = vadd.f32 %v1723, %v1731
    %v1734 = vtanh.pop %v1733
    %1736 = vrot.lane.b32.xlu0 %v1734, 64
    %v1737 = vpop.permute.xlu0 %1736
    %v1739 = vmul.f32 %v1721, %v1737
    %v1741 = vrot.slane %v1739, 6
    %vm1743 = vcmask 1041408
    %v1744 = vsel %vm1743, %v885, %v1741
    %v1745 = vld [vmem:[%s5] sm:$0xff]
    %v1746 = vld [vmem:[%s5 + $0x8] sm:$0xff]
    %v1747 = vld [vmem:[%s5 + $0x10] sm:$0xff]
    %v1748 = vld [vmem:[%s5 + $0x18] sm:$0xff]
    %v1749 = vld [vmem:[%s6] sm:$0x1]
    %v1751 = vlaneseq
    %v1752 = vshrl.u32 %v1751, 7
    %v1753 = vsub.s32 0, %v1752
    %v1754 = vrot.slane %v1749, %v1753
    %1757 = vrot.lane.b32.xlu0 %v1744, 32
    %v1758 = vpop.permute.xlu0 %1757
    %v1759 = vsel %vm898, %v1758, 0
    %1761 = vmatprep.subr.mxu0 0.0
    %1762 = vmatpush1.msra.mxu0 0.0
    %1763 = vmatprep.subr.mxu0 0.0
    %1764 = vmatpush1.msra.mxu0 0.0
    %1765 = vmatprep.subr.mxu0 0.0
    %1766 = vmatpush1.msra.mxu0 0.0
    %1767 = vmatprep.subr.mxu0 0.0
    %1768 = vmatpush1.msra.mxu0 0.0
    %1769 = vmatprep.subr.mxu0 0.0
    %1770 = vmatpush1.msra.mxu0 0.0
    %1771 = vmatprep.subr.mxu0 0.0
    %1772 = vmatpush1.msra.mxu0 0.0
    %1773 = vmatprep.subr.mxu0 0.0
    %1774 = vmatpush1.msra.mxu0 0.0
    %1775 = vmatprep.subr.mxu0 0.0
    %1776 = vmatpush1.msra.mxu0 0.0
    %1777 = vmatprep.subr.mxu0 0.0
    %1778 = vmatpush1.msra.mxu0 0.0
    %1779 = vmatprep.subr.mxu0 0.0
    %1780 = vmatpush1.msra.mxu0 0.0
    %1781 = vmatprep.subr.mxu0 0.0
    %1782 = vmatpush1.msra.mxu0 0.0
    %1783 = vmatprep.subr.mxu0 0.0
    %1784 = vmatpush1.msra.mxu0 0.0
    %1785 = vmatprep.subr.mxu0 0.0
    %1786 = vmatpush1.msra.mxu0 %v1748
    %1787 = vmatprep.subr.mxu0 0.0
    %1788 = vmatpush1.msra.mxu0 %v1747
    %1789 = vmatprep.subr.mxu0 0.0
    %1790 = vmatpush1.msra.mxu0 %v1746
    %1791 = vmatprep.subr.mxu0 0.0
    %1792 = vmatpush1.msra.mxu0 %v1745
    %1793 = vmatprep.subr.mxu0 0.0
    %1794 = vmatpush2.msra.mxu0 0.0
    %1795 = vmatprep.subr.mxu0 0.0
    %1796 = vmatpush2.msra.mxu0 0.0
    %1797 = vmatprep.subr.mxu0 0.0
    %1798 = vmatpush2.msra.mxu0 0.0
    %1799 = vmatprep.subr.mxu0 0.0
    %1800 = vmatpush2.msra.mxu0 0.0
    %1801 = vmatprep.subr.mxu0 0.0
    %1802 = vmatpush2.msra.mxu0 0.0
    %1803 = vmatprep.subr.mxu0 0.0
    %1804 = vmatpush2.msra.mxu0 0.0
    %1805 = vmatprep.subr.mxu0 0.0
    %1806 = vmatpush2.msra.mxu0 0.0
    %1807 = vmatprep.subr.mxu0 0.0
    %1808 = vmatpush2.msra.mxu0 0.0
    %1809 = vmatprep.subr.mxu0 0.0
    %1810 = vmatpush2.msra.mxu0 0.0
    %1811 = vmatprep.subr.mxu0 0.0
    %1812 = vmatpush2.msra.mxu0 0.0
    %1813 = vmatprep.subr.mxu0 0.0
    %1814 = vmatpush2.msra.mxu0 0.0
    %1815 = vmatprep.subr.mxu0 0.0
    %1816 = vmatpush2.msra.mxu0 0.0
    %1817 = vmatprep.subr.mxu0 0.0
    %1818 = vmatpush2.msra.mxu0 0.0
    %1819 = vmatprep.subr.mxu0 0.0
    %1820 = vmatpush2.msra.mxu0 0.0
    %1821 = vmatprep.subr.mxu0 0.0
    %1822 = vmatpush2.msra.mxu0 0.0
    %1823 = vmatprep.subr.mxu0 0.0
    %1824 = vmatpush2.msra.mxu0 0.0
    %1825 = vmatprep.mubr.f32.mxu0 0.0
    %1826 = vmatmul.mubr.f32.gmra.mxu0 %v1759
    %v1827 = vpop.f32.mrf.mxu0
    %v1828 = vadd.f32 %v1754, %v1827
    %v1829 = vpop.f32.mrf.mxu0
    %1830 = vdwg.mxu0
    %vm1831 = vcmask 27648
    %1832 = vst.msk [vmem:[#allocation5] sm:$0xf] %vm1831, %v1828
    // Predicated region
    $region34: #{tpu_custom_call.1} parent=1 // pred_check
      _
    $region35: #{tpu_custom_call.1} parent=1 // pred_check_branch
      %1834 = sbr.rel (0) target = $region37
    $region36: #{tpu_custom_call.1} parent=1 // pred_region
      %s1836 = ssub.s32 64, 64
      %1837 = vsyncadd [#allocation4], %s1836
      %s1839 = sshll.u32 [#allocation5], 4
      %s1840 = int_to_ptr.vmem [resolvable:$true] %s1839
      %1842 = dma.vmem_to_hbm [thread:$0]  %s1840, 64, %s7, [#allocation4]
    $region37: #{tpu_custom_call.1} parent=1 // pred_fallthru
      _
    // Predicated region
    $region38: #{tpu_custom_call.1} parent=1 // pred_check
      _
    $region39: #{tpu_custom_call.1} parent=1 // pred_check_branch
      %1844 = sbr.rel (0) target = $region41
    $region40: #{tpu_custom_call.1} parent=1 // pred_region
      %1845 = dma.done [#allocation4], 64
    $region41: #{tpu_custom_call.1} parent=1 // pred_fallthru
      _
    %1846 = vsyncpa [#allocation3], 1
    %1847 = vsyncpa [#allocation4], 1

</llo_original>
